<compile_context>
chip_gen: v5e
topology: v5e:2x2
jax: 0.10.0
libtpu: 0.0.40
codegen_flags: <defaults>
</compile_context>

<pallas_src>
import jax
import jax.numpy as jnp
from jax.experimental import pallas as pl
from jax.experimental.pallas import tpu as pltpu


def rnn_seq_kernel(xs_ref, h0_ref, w1x_ref, w1h_ref, b1_ref, w2_ref, b2_ref,
                   logp_ref, hfin_ref):
    T = xs_ref.shape[0]
    H = hfin_ref.shape[1]

    def step(t, h):
        x = xs_ref[t]                                          # [Bs, V] bf16 (one-hot)

        # Fused i2h + i2o, split over the concat axis (no per-step concat):
        #   [x | h] @ [[W1x],[W1h]] + [b_i2h | b_i2o] = [new_hidden | output]
        f1 = (jnp.dot(x, w1x_ref[...], preferred_element_type=jnp.float32)
              + jnp.dot(h, w1h_ref[...], preferred_element_type=jnp.float32)
              + b1_ref[...])                                   # [Bs, H+O] f32
        hidden_new = f1[:, :H]                                 # [Bs, H] f32 (carry stays f32)

        # o2o: cat(new_hidden, output) is exactly f1 (biases already folded in).
        logits = (jnp.dot(f1.astype(jnp.bfloat16), w2_ref[...],
                          preferred_element_type=jnp.float32)
                  + b2_ref[...])                               # [Bs, O] f32

        # TODO(synk): nn.Dropout(0.1) is identity in eval mode; training-mode
        # dropout would need pltpu.prng_seed + pltpu.stateful_bernoulli.

        # Numerically-stable log_softmax over the feature axis (dim=1).
        m = jnp.max(logits, axis=-1, keepdims=True)
        shifted = logits - m
        lse = jnp.log(jnp.sum(jnp.exp(shifted), axis=-1, keepdims=True))
        logp_ref[t] = shifted - lse

        return hidden_new                                      # carried recurrence (f32)

    h_final = jax.lax.fori_loop(0, T, step, h0_ref[...])
    hfin_ref[...] = h_final


def rnn_forward_sequence(xs_bf16, h0, params, *, num_shards=2):
    """xs_bf16: [T, B, V] bf16 (one-hot / dense), h0: [B, H] f32.
    Returns (log_probs [T, B, O] f32, final hidden [B, H] f32)."""
    T, B, V = xs_bf16.shape
    H = h0.shape[1]
    O = params["b2"].shape[1]

    # Shard the (independent) batch across grid steps so v7x can use both
    # TensorCores; fall back to a single shard if the batch doesn't tile cleanly.
    if B % num_shards != 0 or (B // num_shards) % 16 != 0:
        num_shards = 1
    Bs = B // num_shards

    const = lambda i: (0, 0)   # weights: resident, same block every grid step

    out_shapes = (jax.ShapeDtypeStruct((T, B, O), jnp.float32),
                  jax.ShapeDtypeStruct((B, H), jnp.float32))

    return pl.pallas_call(
        rnn_seq_kernel,
        out_shape=out_shapes,
        grid=(num_shards,),
        in_specs=[
            pl.BlockSpec((T, Bs, V), lambda i: (0, i, 0)),   # whole sequence, one batch shard
            pl.BlockSpec((Bs, H), lambda i: (i, 0)),         # h0 shard
            pl.BlockSpec((V, H + O), const),                 # W1x = [w_i2h|w_i2o] input rows (bf16)
            pl.BlockSpec((H, H + O), const),                 # W1h = [w_i2h|w_i2o] hidden rows (f32)
            pl.BlockSpec((1, H + O), const),                 # b1 = [b_i2h|b_i2o] (f32)
            pl.BlockSpec((H + O, O), const),                 # W2 = o2o (bf16)
            pl.BlockSpec((1, O), const),                     # b2 (f32)
        ],
        out_specs=(pl.BlockSpec((T, Bs, O), lambda i: (0, i, 0)),
                   pl.BlockSpec((Bs, H), lambda i: (i, 0))),
        compiler_params=pltpu.CompilerParams(
            # Batch shards are fully independent (the serial recurrence lives
            # inside the kernel body), so this axis is safe as "parallel".
            dimension_semantics=("parallel",)),
    )(xs_bf16, h0, params["w1x"], params["w1h"], params["b1"],
      params["w2"], params["b2"])


def init_params(key, vocab_size, hidden_size, output_size):
    """Deterministic init with fused, pre-transposed ([in, out]) weight layout,
    split into input-rows (bf16) and hidden-rows (f32) of the fused W1."""
    ks = jax.random.split(key, 6)
    scale = 0.02

    w_i2h = scale * jax.random.normal(ks[0], (vocab_size + hidden_size, hidden_size), jnp.float32)
    b_i2h = scale * jax.random.normal(ks[1], (1, hidden_size), jnp.float32)
    w_i2o = scale * jax.random.normal(ks[2], (vocab_size + hidden_size, output_size), jnp.float32)
    b_i2o = scale * jax.random.normal(ks[3], (1, output_size), jnp.float32)
    w_o2o = scale * jax.random.normal(ks[4], (hidden_size + output_size, output_size), jnp.float32)
    b_o2o = scale * jax.random.normal(ks[5], (1, output_size), jnp.float32)

    V = vocab_size
    w1 = jnp.concatenate([w_i2h, w_i2o], axis=1)              # (V+H, H+O)
    return {
        "w1x": w1[:V].astype(jnp.bfloat16),                   # (V, H+O)  x path (bf16, exact gather for one-hot)
        "w1h": w1[V:],                                        # (H, H+O)  recurrence path kept f32
        "b1": jnp.concatenate([b_i2h, b_i2o], axis=1),        # (1, H+O)  f32
        "w2": w_o2o.astype(jnp.bfloat16),                     # (H+O, O)
        "b2": b_o2o,                                          # (1, O)    f32
    }


def reference_forward(xs_f32, h0, p):
    """Pure-JAX reference mirroring the PyTorch module structure (eval-mode
    dropout), run step-by-step with lax.scan on the unpacked weights."""
    w1x = p["w1x"].astype(jnp.float32)
    w1h = p["w1h"]
    H = w1h.shape[0]
    w1 = jnp.concatenate([w1x, w1h], axis=0)                  # (V+H, H+O)
    w_i2h, w_i2o = w1[:, :H], w1[:, H:]
    b_i2h, b_i2o = p["b1"][:, :H], p["b1"][:, H:]
    w_o2o = p["w2"].astype(jnp.float32)
    b_o2o = p["b2"]

    def step(h, x):
        input_combined = jnp.concatenate([x, h], axis=1)
        hidden = input_combined @ w_i2h + b_i2h
        output = input_combined @ w_i2o + b_i2o
        output_combined = jnp.concatenate([hidden, output], axis=1)
        output = output_combined @ w_o2o + b_o2o
        # dropout(0.1) == identity in eval mode
        return hidden, jax.nn.log_softmax(output, axis=1)

    h_final, log_probs = jax.lax.scan(step, h0, xs_f32)
    return log_probs, h_final


if __name__ == "__main__":
    # Small, lane-aligned shapes consistent with the module (vocab == output).
    batch = 32            # >=16 fills bf16 sublane packing; split 2-way across TCs on v7x
    vocab_size = 256
    hidden_size = 128
    output_size = vocab_size
    seq_len = 16

    key = jax.random.PRNGKey(0)
    k_param, k_x = jax.random.split(key)

    params = init_params(k_param, vocab_size, hidden_size, output_size)

    # One-hot token inputs for a whole sequence (exact in bf16) + initHidden() zeros.
    toks = jax.random.randint(k_x, (seq_len, batch), 0, vocab_size)
    xs = jax.nn.one_hot(toks, vocab_size, dtype=jnp.bfloat16)     # (T, B, V)
    hidden0 = jnp.zeros((batch, hidden_size), jnp.float32)        # initHidden(), batched

    log_probs, h_final = rnn_forward_sequence(xs, hidden0, params)
    jax.block_until_ready((log_probs, h_final))

    ref_lp, ref_h = reference_forward(xs.astype(jnp.float32), hidden0, params)
    assert log_probs.shape == (seq_len, batch, output_size)
    assert h_final.shape == (batch, hidden_size)
    # bf16 o2o / x-path operands in the kernel -> slightly looser tolerance vs f32 ref.
    assert jnp.allclose(log_probs, ref_lp, atol=2e-2, rtol=2e-2)
    assert jnp.allclose(h_final, ref_h, atol=2e-2, rtol=2e-2)

    print("KERNEL_OK")
</pallas_src>

<mosaic_0001>
module attributes {stable_mosaic.version = 11 : i64} {
  func.func @rnn_seq_kernel(%arg0: i32, %arg1: memref<16x16x256xbf16, #tpu.memory_space<vmem>>, %arg2: memref<16x128xf32, #tpu.memory_space<vmem>>, %arg3: memref<256x384xbf16, #tpu.memory_space<vmem>>, %arg4: memref<128x384xf32, #tpu.memory_space<vmem>>, %arg5: memref<1x384xf32, #tpu.memory_space<vmem>>, %arg6: memref<384x256xbf16, #tpu.memory_space<vmem>>, %arg7: memref<1x256xf32, #tpu.memory_space<vmem>>, %arg8: memref<16x16x256xf32, #tpu.memory_space<vmem>>, %arg9: memref<16x128xf32, #tpu.memory_space<vmem>>) attributes {dimension_semantics = [#tpu.dimension_semantics<parallel>], iteration_bounds = array<i64: 2>, scalar_prefetch = 0 : i64, scratch_operands = 0 : i64, tpu.core_type = #tpu.core_type<tc>, window_params = [{transform_indices = @transform_0, window_bounds = array<i64: 16, 16, 256>}, {transform_indices = @transform_1, window_bounds = array<i64: 16, 128>}, {pipeline_mode = #tpu.pipeline_mode<synchronous>, transform_indices = @transform_2, window_bounds = array<i64: 256, 384>}, {pipeline_mode = #tpu.pipeline_mode<synchronous>, transform_indices = @transform_3, window_bounds = array<i64: 128, 384>}, {pipeline_mode = #tpu.pipeline_mode<synchronous>, transform_indices = @transform_4, window_bounds = array<i64: 1, 384>}, {pipeline_mode = #tpu.pipeline_mode<synchronous>, transform_indices = @transform_5, window_bounds = array<i64: 384, 256>}, {pipeline_mode = #tpu.pipeline_mode<synchronous>, transform_indices = @transform_6, window_bounds = array<i64: 1, 256>}, {transform_indices = @transform_7, window_bounds = array<i64: 16, 16, 256>}, {transform_indices = @transform_8, window_bounds = array<i64: 16, 128>}]} {
    %c0 = arith.constant 0 : index
    %c0_0 = arith.constant 0 : index
    %0 = vector.load %arg2[%c0, %c0_0] : memref<16x128xf32, #tpu.memory_space<vmem>>, vector<16x128xf32>
    %c0_i32 = arith.constant 0 : i32
    %c16_i32 = arith.constant 16 : i32
    %1 = arith.addi %c0_i32, %c16_i32 : i32
    %c1_i32 = arith.constant 1 : i32
    %2 = scf.for %arg10 = %c0_i32 to %1 step %c1_i32 iter_args(%arg11 = %0) -> (vector<16x128xf32>)  : i32 {
      %4 = arith.index_cast %arg10 : i32 to index
      %c0_4 = arith.constant 0 : index
      %c0_5 = arith.constant 0 : index
      %5 = vector.load %arg1[%4, %c0_4, %c0_5] : memref<16x16x256xbf16, #tpu.memory_space<vmem>>, vector<1x16x256xbf16>
      %6 = vector.shape_cast %5 : vector<1x16x256xbf16> to vector<16x256xbf16>
      %c0_6 = arith.constant 0 : index
      %c0_7 = arith.constant 0 : index
      %7 = vector.load %arg3[%c0_6, %c0_7] : memref<256x384xbf16, #tpu.memory_space<vmem>>, vector<256x384xbf16>
      %cst = arith.constant dense<0.000000e+00> : vector<16x384xf32>
      %8 = tpu.matmul %6, %7, %cst {dimension_numbers = #tpu.dot_dimension_numbers<[1], [0], [0], [1], [0, 0, 1, 1], [], []>} : vector<16x256xbf16>, vector<256x384xbf16>, vector<16x384xf32> -> vector<16x384xf32>
      %c0_8 = arith.constant 0 : index
      %c0_9 = arith.constant 0 : index
      %9 = vector.load %arg4[%c0_8, %c0_9] : memref<128x384xf32, #tpu.memory_space<vmem>>, vector<128x384xf32>
      %cst_10 = arith.constant dense<0.000000e+00> : vector<16x384xf32>
      %10 = tpu.matmul %arg11, %9, %cst_10 {dimension_numbers = #tpu.dot_dimension_numbers<[1], [0], [0], [1], [0, 0, 1, 1], [], []>} : vector<16x128xf32>, vector<128x384xf32>, vector<16x384xf32> -> vector<16x384xf32>
      %11 = arith.addf %8, %10 : vector<16x384xf32>
      %c0_11 = arith.constant 0 : index
      %c0_12 = arith.constant 0 : index
      %12 = vector.load %arg5[%c0_11, %c0_12] : memref<1x384xf32, #tpu.memory_space<vmem>>, vector<1x384xf32>
      %13 = vector.broadcast %12 : vector<1x384xf32> to vector<16x384xf32>
      %14 = arith.addf %11, %13 : vector<16x384xf32>
      %15 = vector.extract_strided_slice %14 {offsets = [0, 0], sizes = [16, 128], strides = [1, 1]} : vector<16x384xf32> to vector<16x128xf32>
      %16 = arith.truncf %14 : vector<16x384xf32> to vector<16x384xbf16>
      %c0_13 = arith.constant 0 : index
      %c0_14 = arith.constant 0 : index
      %17 = vector.load %arg6[%c0_13, %c0_14] : memref<384x256xbf16, #tpu.memory_space<vmem>>, vector<384x256xbf16>
      %cst_15 = arith.constant dense<0.000000e+00> : vector<16x256xf32>
      %18 = tpu.matmul %16, %17, %cst_15 {dimension_numbers = #tpu.dot_dimension_numbers<[1], [0], [0], [1], [0, 0, 1, 1], [], []>} : vector<16x384xbf16>, vector<384x256xbf16>, vector<16x256xf32> -> vector<16x256xf32>
      %c0_16 = arith.constant 0 : index
      %c0_17 = arith.constant 0 : index
      %19 = vector.load %arg7[%c0_16, %c0_17] : memref<1x256xf32, #tpu.memory_space<vmem>>, vector<1x256xf32>
      %20 = vector.broadcast %19 : vector<1x256xf32> to vector<16x256xf32>
      %21 = arith.addf %18, %20 : vector<16x256xf32>
      %cst_18 = arith.constant dense<0xFF800000> : vector<16xf32>
      %22 = vector.multi_reduction <maximumf>, %21, %cst_18 [1] : vector<16x256xf32> to vector<16xf32>
      %23 = vector.shape_cast %22 : vector<16xf32> to vector<16x1xf32>
      %24 = vector.broadcast %23 : vector<16x1xf32> to vector<16x256xf32>
      %25 = arith.subf %21, %24 : vector<16x256xf32>
      %26 = math.exp %25 : vector<16x256xf32>
      %cst_19 = arith.constant dense<0.000000e+00> : vector<16xf32>
      %27 = vector.multi_reduction <add>, %26, %cst_19 [1] : vector<16x256xf32> to vector<16xf32>
      %28 = vector.shape_cast %27 : vector<16xf32> to vector<16x1xf32>
      %29 = math.log %28 : vector<16x1xf32>
      %30 = vector.broadcast %29 : vector<16x1xf32> to vector<16x256xf32>
      %31 = arith.subf %25, %30 : vector<16x256xf32>
      %32 = arith.index_cast %arg10 : i32 to index
      %c0_20 = arith.constant 0 : index
      %c0_21 = arith.constant 0 : index
      %33 = vector.load %arg8[%32, %c0_20, %c0_21] : memref<16x16x256xf32, #tpu.memory_space<vmem>>, vector<1x16x256xf32>
      %34 = vector.shape_cast %33 : vector<1x16x256xf32> to vector<16x256xf32>
      %35 = vector.shape_cast %31 : vector<16x256xf32> to vector<1x16x256xf32>
      tpu.vector_store %arg8[%32, %c0_20, %c0_21], %35 {strides = array<i32>} : memref<16x16x256xf32, #tpu.memory_space<vmem>>, vector<1x16x256xf32>,
      scf.yield %15 : vector<16x128xf32>
    }
    %c16_i32_1 = arith.constant 16 : i32
    %c0_2 = arith.constant 0 : index
    %c0_3 = arith.constant 0 : index
    %3 = vector.load %arg9[%c0_2, %c0_3] : memref<16x128xf32, #tpu.memory_space<vmem>>, vector<16x128xf32>
    tpu.vector_store %arg9[%c0_2, %c0_3], %2 {strides = array<i32>} : memref<16x128xf32, #tpu.memory_space<vmem>>, vector<16x128xf32>,
    return
  }
  func.func @transform_0(%arg0: i32) -> (i32, i32, i32) {
    %c0_i32 = arith.constant 0 : i32
    %c0_i32_0 = arith.constant 0 : i32
    %c0_i32_1 = arith.constant 0 : i32
    return %c0_i32, %arg0, %c0_i32_0 : i32, i32, i32
  }
  func.func @transform_1(%arg0: i32) -> (i32, i32) {
    %c0_i32 = arith.constant 0 : i32
    %c0_i32_0 = arith.constant 0 : i32
    return %arg0, %c0_i32 : i32, i32
  }
  func.func @transform_2(%arg0: i32) -> (i32, i32) {
    %c0_i32 = arith.constant 0 : i32
    %c0_i32_0 = arith.constant 0 : i32
    %c0_i32_1 = arith.constant 0 : i32
    return %c0_i32, %c0_i32_0 : i32, i32
  }
  func.func @transform_3(%arg0: i32) -> (i32, i32) {
    %c0_i32 = arith.constant 0 : i32
    %c0_i32_0 = arith.constant 0 : i32
    %c0_i32_1 = arith.constant 0 : i32
    return %c0_i32, %c0_i32_0 : i32, i32
  }
  func.func @transform_4(%arg0: i32) -> (i32, i32) {
    %c0_i32 = arith.constant 0 : i32
    %c0_i32_0 = arith.constant 0 : i32
    %c0_i32_1 = arith.constant 0 : i32
    return %c0_i32, %c0_i32_0 : i32, i32
  }
  func.func @transform_5(%arg0: i32) -> (i32, i32) {
    %c0_i32 = arith.constant 0 : i32
    %c0_i32_0 = arith.constant 0 : i32
    %c0_i32_1 = arith.constant 0 : i32
    return %c0_i32, %c0_i32_0 : i32, i32
  }
  func.func @transform_6(%arg0: i32) -> (i32, i32) {
    %c0_i32 = arith.constant 0 : i32
    %c0_i32_0 = arith.constant 0 : i32
    %c0_i32_1 = arith.constant 0 : i32
    return %c0_i32, %c0_i32_0 : i32, i32
  }
  func.func @transform_7(%arg0: i32) -> (i32, i32, i32) {
    %c0_i32 = arith.constant 0 : i32
    %c0_i32_0 = arith.constant 0 : i32
    %c0_i32_1 = arith.constant 0 : i32
    return %c0_i32, %arg0, %c0_i32_0 : i32, i32, i32
  }
  func.func @transform_8(%arg0: i32) -> (i32, i32) {
    %c0_i32 = arith.constant 0 : i32
    %c0_i32_0 = arith.constant 0 : i32
    return %arg0, %c0_i32 : i32, i32
  }
}

</mosaic_0001>

<llo_original>
// kernel: tpu_custom_call.1
$region0: #{tpu_custom_call.1}
  #allocation0 [shape = 'u32[]', space=smem, size = 0x4, offset = 0x4, fixed_abs, tag = 'smem constant byte address 0x4 - core index']
  #allocation1 [shape = 'u32[72,128]{1,0:T(1,128)}', space=vmem, size = 0x9000, scoped, tag = 'internal scratch']
  #allocation14 [shape = 's32[]', space=sflag, size = 0x4, offset = 0, fixed_abs, tag = 'sflag constant byte address 0x0 - dummy sync flag']
  #allocation16 [shape = 's32[]', space=sflag, size = 0x4, offset = 0, fixed_abs, tag = 'sflag constant byte address 0x0 - dummy sync flag']
  %s0 = inlined_call_operand.hbm [shape: bf16[16,32,256], index: 0, kind: input, shape index: {}]
  %s1 = inlined_call_operand.hbm [shape: f32[32,128], index: 1, kind: input, shape index: {}]
  %s2 = inlined_call_operand.hbm [shape: bf16[256,384], index: 2, kind: input, shape index: {}]
  %s3 = inlined_call_operand.hbm [shape: f32[128,384], index: 3, kind: input, shape index: {}]
  %s4 = inlined_call_operand.vmem [shape: f32[1,384], index: 4, kind: input, shape index: {}]
  %s5 = inlined_call_operand.hbm [shape: bf16[384,256], index: 5, kind: input, shape index: {}]
  %s6 = inlined_call_operand.vmem [shape: f32[1,256], index: 6, kind: input, shape index: {}]
  %s7 = inlined_call_operand.hbm [shape: f32[16,32,256], index: 7, kind: output, shape index: {0}]
  %s8 = inlined_call_operand.hbm [shape: f32[32,128], index: 8, kind: output, shape index: {1}]
  %9 = xla_tuple %s7, %s8
  %s10 = sld [smem:[#allocation0]]
  $region96: #{tpu_custom_call.1} parent=0
    _
  %s12 = ssub.s32 1, %s10
  %s13 = scalar_select 0, %s12, %s10
  $region1: #{tpu_custom_call.1} parent=0
    #allocation2 [shape = 'u8[262144]{0}', space=vmem, size = 0x40000, scoped, tag = 'input window, operand 0']
    #allocation3 [shape = 's32[2]{0}', space=sflag, size = 0x8, scoped, tag = 'scoped memory for tpu_custom_call.1']
    #allocation4 [shape = 's32[2]{0}', space=sflag, size = 0x8, scoped, tag = 'scoped memory for tpu_custom_call.1']
    #allocation5 [shape = 'u8[16384]{0}', space=vmem, size = 0x4000, scoped, tag = 'input window, operand 1']
    #allocation6 [shape = 's32[2]{0}', space=sflag, size = 0x8, scoped, tag = 'scoped memory for tpu_custom_call.1']
    #allocation7 [shape = 'u8[196608]{0}', space=vmem, size = 0x30000, scoped, tag = 'input window, operand 2, single buffered']
    #allocation8 [shape = 'u8[196608]{0}', space=vmem, size = 0x30000, scoped, tag = 'input window, operand 3, single buffered']
    #allocation9 [shape = 's32[1]{0}', space=sflag, size = 0x4, scoped, tag = 'scoped memory for tpu_custom_call.1']
    #allocation10 [shape = 'u8[196608]{0}', space=vmem, size = 0x30000, scoped, tag = 'input window, operand 5, single buffered']
    #allocation11 [shape = 'u8[524288]{0}', space=vmem, size = 0x80000, scoped, tag = 'output window, operand 0']
    #allocation12 [shape = 'u8[16384]{0}', space=vmem, size = 0x4000, scoped, tag = 'output window, operand 1']
    #allocation13 [shape = 's32[2]{0}', space=sflag, size = 0x8, scoped, tag = 'scoped memory for tpu_custom_call.1']
    %14 = vsyncpa [#allocation3], 0
    %s15 = scalar_lea.sflag [#allocation3], 1
    %16 = vsyncpa %s15, 0
    %17 = vsyncpa [#allocation6], 0
    %s18 = scalar_lea.sflag [#allocation6], 1
    %19 = vsyncpa %s18, 0
    %20 = vsyncpa [#allocation9], 0
    %21 = vsyncpa [#allocation4], 0
    %s22 = scalar_lea.sflag [#allocation4], 1
    %23 = vsyncpa %s22, 0
    %24 = vsyncpa [#allocation13], 0
    %s25 = scalar_lea.sflag [#allocation13], 1
    %26 = vsyncpa %s25, 0
    loop: start=0, step=1, limit=4
    $region2: #{tpu_custom_call.1} parent=1 // loop_pre_header
      _
    $region3: #{tpu_custom_call.1} parent=1 // loop_header
      %s28 = sphi 0, %s32
      %p29 = scmp.ge.s32.totalorder %s28, 4
      %s38 = sphi 0, %s40
      %s41 = sphi 0, %s38
      %s42 = sphi 0, %s41
      %s58 = sphi 0, %s42
      %s64 = sphi 0, %s66
      %s67 = sphi 0, %s64
      %s68 = sphi 0, %s67
      %s84 = sphi 0, %s68
      %s88 = sphi 0, %s88
      %s90 = sphi 0, %s88
      %s91 = sphi 0, %s90
      %s105 = sphi 0, %s91
      %s109 = sphi 0, %s109
      %s111 = sphi 0, %s109
      %s112 = sphi 0, %s111
      %s126 = sphi 0, %s112
      %s130 = sphi 0, %s130
      %s132 = sphi 0, %s130
      %s133 = sphi 0, %s132
      %s147 = sphi 0, %s133
      %s151 = sphi 0, %s151
      %s153 = sphi 0, %s151
      %s154 = sphi 0, %s153
      %s168 = sphi 0, %s154
      %s172 = sphi 0, %s172
      %s174 = sphi 0, %s172
      %s175 = sphi 0, %s174
      %s189 = sphi 0, %s175
      %s195 = sphi 0, %s197
      %s198 = sphi 0, %s195
      %s199 = sphi 0, %s198
      %s215 = sphi 0, %s199
      %s221 = sphi 0, %s223
      %s224 = sphi 0, %s221
      %s225 = sphi 0, %s224
      %s241 = sphi 0, %s225
    $region4: #{tpu_custom_call.1} parent=1 // loop_header_branch
      %31 = sbr.rel (%p29) target = $region8
    $region5: #{tpu_custom_call.1} parent=1 // loop_body
      %s33 = ssub.s32 %s28, 1
      %s34 = ssub.s32 %s28, 2
      %s35 = sadd.s32 %s28, 1
      %s36 = ssub.s32 %s28, %s35
      %p37 = scmp.eq.s32.totalorder %s36, 0
      %s39 = sadd.s32 %s38, 1
      %s40 = scalar_select %p37, %s38, %s39
      %p43 = pneg %p37
      %p44 = scmp.eq.s32.totalorder %s28, 1
      %p45 = por %p43, %p44
      %p46 = scmp.ne.s32.totalorder %s38, %s41
      %p47 = scmp.eq.s32.totalorder %s28, 0
      %p48 = por %p46, %p47
      %p49 = scmp.ne.s32.totalorder %s38, %s41
      %p50 = scmp.eq.s32.totalorder %s33, 1
      %p51 = por %p49, %p50
      %p52 = scmp.ne.s32.totalorder %s41, %s42
      %p53 = scmp.eq.s32.totalorder %s33, 0
      %p54 = por %p52, %p53
      %p55 = scmp.ne.s32.totalorder %s41, %s42
      %p56 = scmp.eq.s32.totalorder %s34, 1
      %p57 = por %p55, %p56
      %p59 = scmp.ne.s32.totalorder %s42, %s58
      %p60 = scmp.eq.s32.totalorder %s34, 0
      %p61 = por %p59, %p60
      %s62 = ssub.s32 %s28, %s35
      %p63 = scmp.eq.s32.totalorder %s62, 0
      %s65 = sadd.s32 %s64, 1
      %s66 = scalar_select %p63, %s64, %s65
      %p69 = pneg %p63
      %p70 = scmp.eq.s32.totalorder %s28, 1
      %p71 = por %p69, %p70
      %p72 = scmp.ne.s32.totalorder %s64, %s67
      %p73 = scmp.eq.s32.totalorder %s28, 0
      %p74 = por %p72, %p73
      %p75 = scmp.ne.s32.totalorder %s64, %s67
      %p76 = scmp.eq.s32.totalorder %s33, 1
      %p77 = por %p75, %p76
      %p78 = scmp.ne.s32.totalorder %s67, %s68
      %p79 = scmp.eq.s32.totalorder %s33, 0
      %p80 = por %p78, %p79
      %p81 = scmp.ne.s32.totalorder %s67, %s68
      %p82 = scmp.eq.s32.totalorder %s34, 1
      %p83 = por %p81, %p82
      %p85 = scmp.ne.s32.totalorder %s68, %s84
      %p86 = scmp.eq.s32.totalorder %s34, 0
      %p87 = por %p85, %p86
      %s89 = sadd.s32 %s88, 1
      %p92 = scmp.eq.s32.totalorder %s28, 1
      %p93 = scmp.ne.s32.totalorder %s88, %s90
      %p94 = scmp.eq.s32.totalorder %s28, 0
      %p95 = por %p93, %p94
      %p96 = scmp.ne.s32.totalorder %s88, %s90
      %p97 = scmp.eq.s32.totalorder %s33, 1
      %p98 = por %p96, %p97
      %p99 = scmp.ne.s32.totalorder %s90, %s91
      %p100 = scmp.eq.s32.totalorder %s33, 0
      %p101 = por %p99, %p100
      %p102 = scmp.ne.s32.totalorder %s90, %s91
      %p103 = scmp.eq.s32.totalorder %s34, 1
      %p104 = por %p102, %p103
      %p106 = scmp.ne.s32.totalorder %s91, %s105
      %p107 = scmp.eq.s32.totalorder %s34, 0
      %p108 = por %p106, %p107
      %s110 = sadd.s32 %s109, 1
      %p113 = scmp.eq.s32.totalorder %s28, 1
      %p114 = scmp.ne.s32.totalorder %s109, %s111
      %p115 = scmp.eq.s32.totalorder %s28, 0
      %p116 = por %p114, %p115
      %p117 = scmp.ne.s32.totalorder %s109, %s111
      %p118 = scmp.eq.s32.totalorder %s33, 1
      %p119 = por %p117, %p118
      %p120 = scmp.ne.s32.totalorder %s111, %s112
      %p121 = scmp.eq.s32.totalorder %s33, 0
      %p122 = por %p120, %p121
      %p123 = scmp.ne.s32.totalorder %s111, %s112
      %p124 = scmp.eq.s32.totalorder %s34, 1
      %p125 = por %p123, %p124
      %p127 = scmp.ne.s32.totalorder %s112, %s126
      %p128 = scmp.eq.s32.totalorder %s34, 0
      %p129 = por %p127, %p128
      %s131 = sadd.s32 %s130, 1
      %p134 = scmp.eq.s32.totalorder %s28, 1
      %p135 = scmp.ne.s32.totalorder %s130, %s132
      %p136 = scmp.eq.s32.totalorder %s28, 0
      %p137 = por %p135, %p136
      %p138 = scmp.ne.s32.totalorder %s130, %s132
      %p139 = scmp.eq.s32.totalorder %s33, 1
      %p140 = por %p138, %p139
      %p141 = scmp.ne.s32.totalorder %s132, %s133
      %p142 = scmp.eq.s32.totalorder %s33, 0
      %p143 = por %p141, %p142
      %p144 = scmp.ne.s32.totalorder %s132, %s133
      %p145 = scmp.eq.s32.totalorder %s34, 1
      %p146 = por %p144, %p145
      %p148 = scmp.ne.s32.totalorder %s133, %s147
      %p149 = scmp.eq.s32.totalorder %s34, 0
      %p150 = por %p148, %p149
      %s152 = sadd.s32 %s151, 1
      %p155 = scmp.eq.s32.totalorder %s28, 1
      %p156 = scmp.ne.s32.totalorder %s151, %s153
      %p157 = scmp.eq.s32.totalorder %s28, 0
      %p158 = por %p156, %p157
      %p159 = scmp.ne.s32.totalorder %s151, %s153
      %p160 = scmp.eq.s32.totalorder %s33, 1
      %p161 = por %p159, %p160
      %p162 = scmp.ne.s32.totalorder %s153, %s154
      %p163 = scmp.eq.s32.totalorder %s33, 0
      %p164 = por %p162, %p163
      %p165 = scmp.ne.s32.totalorder %s153, %s154
      %p166 = scmp.eq.s32.totalorder %s34, 1
      %p167 = por %p165, %p166
      %p169 = scmp.ne.s32.totalorder %s154, %s168
      %p170 = scmp.eq.s32.totalorder %s34, 0
      %p171 = por %p169, %p170
      %s173 = sadd.s32 %s172, 1
      %p176 = scmp.eq.s32.totalorder %s28, 1
      %p177 = scmp.ne.s32.totalorder %s172, %s174
      %p178 = scmp.eq.s32.totalorder %s28, 0
      %p179 = por %p177, %p178
      %p180 = scmp.ne.s32.totalorder %s172, %s174
      %p181 = scmp.eq.s32.totalorder %s33, 1
      %p182 = por %p180, %p181
      %p183 = scmp.ne.s32.totalorder %s174, %s175
      %p184 = scmp.eq.s32.totalorder %s33, 0
      %p185 = por %p183, %p184
      %p186 = scmp.ne.s32.totalorder %s174, %s175
      %p187 = scmp.eq.s32.totalorder %s34, 1
      %p188 = por %p186, %p187
      %p190 = scmp.ne.s32.totalorder %s175, %s189
      %p191 = scmp.eq.s32.totalorder %s34, 0
      %p192 = por %p190, %p191
      %s193 = ssub.s32 %s28, %s35
      %p194 = scmp.eq.s32.totalorder %s193, 0
      %s196 = sadd.s32 %s195, 1
      %s197 = scalar_select %p194, %s195, %s196
      %p200 = pneg %p194
      %p201 = scmp.eq.s32.totalorder %s28, 1
      %p202 = por %p200, %p201
      %p203 = scmp.ne.s32.totalorder %s195, %s198
      %p204 = scmp.eq.s32.totalorder %s28, 0
      %p205 = por %p203, %p204
      %p206 = scmp.ne.s32.totalorder %s195, %s198
      %p207 = scmp.eq.s32.totalorder %s33, 1
      %p208 = por %p206, %p207
      %p209 = scmp.ne.s32.totalorder %s198, %s199
      %p210 = scmp.eq.s32.totalorder %s33, 0
      %p211 = por %p209, %p210
      %p212 = scmp.ne.s32.totalorder %s198, %s199
      %p213 = scmp.eq.s32.totalorder %s34, 1
      %p214 = por %p212, %p213
      %p216 = scmp.ne.s32.totalorder %s199, %s215
      %p217 = scmp.eq.s32.totalorder %s34, 0
      %p218 = por %p216, %p217
      %s219 = ssub.s32 %s28, %s35
      %p220 = scmp.eq.s32.totalorder %s219, 0
      %s222 = sadd.s32 %s221, 1
      %s223 = scalar_select %p220, %s221, %s222
      %p226 = pneg %p220
      %p227 = scmp.eq.s32.totalorder %s28, 1
      %p228 = por %p226, %p227
      %p229 = scmp.ne.s32.totalorder %s221, %s224
      %p230 = scmp.eq.s32.totalorder %s28, 0
      %p231 = por %p229, %p230
      %p232 = scmp.ne.s32.totalorder %s221, %s224
      %p233 = scmp.eq.s32.totalorder %s33, 1
      %p234 = por %p232, %p233
      %p235 = scmp.ne.s32.totalorder %s224, %s225
      %p236 = scmp.eq.s32.totalorder %s33, 0
      %p237 = por %p235, %p236
      %p238 = scmp.ne.s32.totalorder %s224, %s225
      %p239 = scmp.eq.s32.totalorder %s34, 1
      %p240 = por %p238, %p239
      %p242 = scmp.ne.s32.totalorder %s225, %s241
      %p243 = scmp.eq.s32.totalorder %s34, 0
      %p244 = por %p242, %p243
      %p245 = scmp.le.s32.totalorder 1, %s28
      %p246 = scmp.lt.s32.totalorder %s28, 3
      %p247 = pnand %p245, %p246
      %p248 = pneg %p247
      // Predicated region
      $region9: #{tpu_custom_call.1} parent=5 // pred_check
        _
      $region10: #{tpu_custom_call.1} parent=5 // pred_check_branch
        %250 = sbr.rel (%p247) target = $region12
      $region11: #{tpu_custom_call.1} parent=5 // pred_region
        %s251 = ssub.s32 %s28, 1
        // Predicated region
        $region13: #{tpu_custom_call.1} parent=11 // pred_check
          %p252 = pneg %p101
        $region14: #{tpu_custom_call.1} parent=11 // pred_check_branch
          %254 = sbr.rel (%p252) target = $region16
        $region15: #{tpu_custom_call.1} parent=11 // pred_region
          %256 = vsyncadd [#allocation6], 0
          %s257 = sshll.u32 %s2, 4
          %s258 = int_to_ptr.hbm [resolvable:$true] %s257
          %s259 = sshll.u32 [#allocation7], 4
          %s260 = int_to_ptr.vmem [resolvable:$true] %s259
          %265 = dma.hbm_to_vmem [thread:$0]  %s258, 6144, %s260, [#allocation6], 192, 192, 12
        $region16: #{tpu_custom_call.1} parent=11 // pred_fallthru
          _
        // Predicated region
        $region17: #{tpu_custom_call.1} parent=11 // pred_check
          %p266 = pneg %p122
        $region18: #{tpu_custom_call.1} parent=11 // pred_check_branch
          %268 = sbr.rel (%p266) target = $region20
        $region19: #{tpu_custom_call.1} parent=11 // pred_region
          %270 = vsyncadd [#allocation9], 0
          %s271 = sshll.u32 %s3, 4
          %s272 = int_to_ptr.hbm [resolvable:$true] %s271
          %s273 = sshll.u32 [#allocation8], 4
          %s274 = int_to_ptr.vmem [resolvable:$true] %s273
          %279 = dma.hbm_to_vmem [thread:$0]  %s272, 6144, %s274, [#allocation9], 384, 384, 24
        $region20: #{tpu_custom_call.1} parent=11 // pred_fallthru
          _
        // Predicated region
        $region21: #{tpu_custom_call.1} parent=11 // pred_check
          %p280 = pneg %p143
        $region22: #{tpu_custom_call.1} parent=11 // pred_check_branch
          %282 = sbr.rel (%p280) target = $region24
        $region23: #{tpu_custom_call.1} parent=11 // pred_region
          _
        $region24: #{tpu_custom_call.1} parent=11 // pred_fallthru
          _
        // Predicated region
        $region25: #{tpu_custom_call.1} parent=11 // pred_check
          %p283 = pneg %p164
        $region26: #{tpu_custom_call.1} parent=11 // pred_check_branch
          %285 = sbr.rel (%p283) target = $region28
        $region27: #{tpu_custom_call.1} parent=11 // pred_region
          %287 = vsyncadd [#allocation9], 0
          %s288 = sshll.u32 %s5, 4
          %s289 = int_to_ptr.hbm [resolvable:$true] %s288
          %s290 = sshll.u32 [#allocation10], 4
          %s291 = int_to_ptr.vmem [resolvable:$true] %s290
          %296 = dma.hbm_to_vmem [thread:$0]  %s289, 6144, %s291, [#allocation9], 128, 128, 8
        $region28: #{tpu_custom_call.1} parent=11 // pred_fallthru
          _
        // Predicated region
        $region29: #{tpu_custom_call.1} parent=11 // pred_check
          %p297 = pneg %p185
        $region30: #{tpu_custom_call.1} parent=11 // pred_check_branch
          %299 = sbr.rel (%p297) target = $region32
        $region31: #{tpu_custom_call.1} parent=11 // pred_region
          _
        $region32: #{tpu_custom_call.1} parent=11 // pred_fallthru
          _
      $region12: #{tpu_custom_call.1} parent=5 // pred_fallthru
        _
      %p300 = scmp.lt.s32.totalorder %s28, 2
      // Predicated region
      $region33: #{tpu_custom_call.1} parent=5 // pred_check
        %p301 = pneg %p300
      $region34: #{tpu_custom_call.1} parent=5 // pred_check_branch
        %303 = sbr.rel (%p301) target = $region36
      $region35: #{tpu_custom_call.1} parent=5 // pred_region
        // Predicated region
        $region37: #{tpu_custom_call.1} parent=35 // pred_check
          %p304 = pneg %p48
        $region38: #{tpu_custom_call.1} parent=35 // pred_check_branch
          %306 = sbr.rel (%p304) target = $region40
        $region39: #{tpu_custom_call.1} parent=35 // pred_region
          #allocation15 [shape = 'u32[6]{0}', space=smem, size = 0x18, scoped, tag = 'DMA stride descriptor']
          %s307 = sand.u32 %s38, 1
          %s308 = scalar_lea.sflag [#allocation3], %s307
          %s309 = sand.u32 %s38, 1
          %s310 = smul.addr %s309, 256
          %s311 = scalar_lea.vmem [#allocation2], %s310
          %s312 = smul.u32 2, %s28
          %314 = vsyncadd %s308, 0
          %s315 = smul.addr %s312, 2
          %s316 = smul.addr %s315, 4
          %s317 = scalar_lea.hbm %s0, %s316
          %s319 = sshll.u32 1, 14
          %s320 = sxor.u32 4294967295, %s319
          %s322 = sld [smem:[#allocation0]]
          %s323 = sadd.s32 2, %s322
          %s325 = sshll.u32 7, 26
          %s326 = sxor.u32 4294967295, %s325
          %s327 = sand.u32 0, %s326
          %s328 = sshll.u32 %s323, 26
          %s329 = sor.u32 %s327, %s328
          %s330 = sshll.u32 %s317, 4
          %s331 = int_to_ptr.hbm [resolvable:$true] %s330
          %s332 = sshll.u32 %s311, 4
          %s333 = int_to_ptr.vmem [resolvable:$true] %s332
          %339 = sst [smem:[#allocation15]] 512
          %s340 = scalar_lea.smem [#allocation15], 1
          %341 = sst [smem:[%s340]] 256
          %s342 = scalar_lea.smem [#allocation15], 2
          %343 = sst [smem:[%s342]] 2
          %s344 = scalar_lea.smem [#allocation15], 3
          %345 = sst [smem:[%s344]] 128
          %s346 = scalar_lea.smem [#allocation15], 4
          %347 = sst [smem:[%s346]] 128
          %s348 = scalar_lea.smem [#allocation15], 5
          %349 = sst [smem:[%s348]] 8
          %351 = dma.general %s331, 4096, %s333, %s308, [#allocation14], [#allocation15], %s329, 0
        $region40: #{tpu_custom_call.1} parent=35 // pred_fallthru
          _
        // Predicated region
        $region41: #{tpu_custom_call.1} parent=35 // pred_check
          %p352 = pneg %p74
        $region42: #{tpu_custom_call.1} parent=35 // pred_check_branch
          %354 = sbr.rel (%p352) target = $region44
        $region43: #{tpu_custom_call.1} parent=35 // pred_region
          %s355 = sand.u32 %s28, 1
          %s356 = scalar_lea.sflag [#allocation6], %s355
          %s357 = sand.u32 %s64, 1
          %s358 = smul.addr %s357, 16
          %s359 = scalar_lea.vmem [#allocation5], %s358
          %s360 = smul.u32 2, %s28
          %362 = vsyncadd %s356, 0
          %s363 = smul.addr %s360, 8
          %s364 = scalar_lea.hbm %s1, %s363
          %s365 = sshll.u32 %s364, 4
          %s366 = int_to_ptr.hbm [resolvable:$true] %s365
          %s367 = sshll.u32 %s359, 4
          %s368 = int_to_ptr.vmem [resolvable:$true] %s367
          %373 = dma.hbm_to_vmem [thread:$0]  %s366, 256, %s368, %s356, 128, 128, 8
        $region44: #{tpu_custom_call.1} parent=35 // pred_fallthru
          _
      $region36: #{tpu_custom_call.1} parent=5 // pred_fallthru
        _
      %p374 = scmp.le.s32.totalorder 1, %s28
      %p375 = scmp.lt.s32.totalorder %s28, 3
      %p376 = pnand %p374, %p375
      %p377 = pneg %p376
      // Predicated region
      $region45: #{tpu_custom_call.1} parent=5 // pred_check
        _
      $region46: #{tpu_custom_call.1} parent=5 // pred_check_branch
        %379 = sbr.rel (%p376) target = $region48
      $region47: #{tpu_custom_call.1} parent=5 // pred_region
        %s380 = ssub.s32 %s28, 1
        %s381 = sand.u32 %s41, 1
        %s382 = scalar_lea.sflag [#allocation3], %s381
        %s383 = sand.u32 %s41, 1
        %s384 = smul.addr %s383, 256
        %s385 = scalar_lea.vmem [#allocation2], %s384
        // Predicated region
        $region49: #{tpu_custom_call.1} parent=47 // pred_check
          %p386 = pneg %p54
        $region50: #{tpu_custom_call.1} parent=47 // pred_check_branch
          %388 = sbr.rel (%p386) target = $region52
        $region51: #{tpu_custom_call.1} parent=47 // pred_region
          %390 = dma.done %s382, 4096
        $region52: #{tpu_custom_call.1} parent=47 // pred_fallthru
          _
        %s391 = sand.u32 %s33, 1
        %s392 = scalar_lea.sflag [#allocation6], %s391
        %s393 = sand.u32 %s67, 1
        %s394 = smul.addr %s393, 16
        %s395 = scalar_lea.vmem [#allocation5], %s394
        // Predicated region
        $region53: #{tpu_custom_call.1} parent=47 // pred_check
          %p396 = pneg %p80
        $region54: #{tpu_custom_call.1} parent=47 // pred_check_branch
          %398 = sbr.rel (%p396) target = $region56
        $region55: #{tpu_custom_call.1} parent=47 // pred_region
          %400 = dma.done %s392, 256
        $region56: #{tpu_custom_call.1} parent=47 // pred_fallthru
          _
        // Predicated region
        $region57: #{tpu_custom_call.1} parent=47 // pred_check
          %p401 = pneg %p101
        $region58: #{tpu_custom_call.1} parent=47 // pred_check_branch
          %403 = sbr.rel (%p401) target = $region60
        $region59: #{tpu_custom_call.1} parent=47 // pred_region
          %405 = dma.done [#allocation6], 6144
        $region60: #{tpu_custom_call.1} parent=47 // pred_fallthru
          _
        // Predicated region
        $region61: #{tpu_custom_call.1} parent=47 // pred_check
          %p406 = pneg %p122
        $region62: #{tpu_custom_call.1} parent=47 // pred_check_branch
          %408 = sbr.rel (%p406) target = $region64
        $region63: #{tpu_custom_call.1} parent=47 // pred_region
          %410 = dma.done [#allocation9], 6144
        $region64: #{tpu_custom_call.1} parent=47 // pred_fallthru
          _
        // Predicated region
        $region65: #{tpu_custom_call.1} parent=47 // pred_check
          %p411 = pneg %p164
        $region66: #{tpu_custom_call.1} parent=47 // pred_check_branch
          %413 = sbr.rel (%p411) target = $region68
        $region67: #{tpu_custom_call.1} parent=47 // pred_region
          %415 = dma.done [#allocation9], 6144
        $region68: #{tpu_custom_call.1} parent=47 // pred_fallthru
          _
        %s416 = sand.u32 %s41, 1
        %s417 = scalar_lea.sflag [#allocation3], %s416
        %s418 = sand.u32 %s41, 1
        %s419 = smul.addr %s418, 256
        %s420 = scalar_lea.vmem [#allocation2], %s419
        %p421 = pneg %p54
        %p422 = pneg %p51
        %s423 = sand.u32 %s33, 1
        %s424 = scalar_lea.sflag [#allocation6], %s423
        %s425 = sand.u32 %s67, 1
        %s426 = smul.addr %s425, 16
        %s427 = scalar_lea.vmem [#allocation5], %s426
        %p428 = pneg %p80
        %p429 = pneg %p77
        %p430 = pneg %p101
        %p431 = pneg %p98
        %p432 = pneg %p122
        %p433 = pneg %p119
        %p434 = pneg %p143
        %p435 = pneg %p140
        %p436 = pneg %p164
        %p437 = pneg %p161
        %p438 = pneg %p185
        %p439 = pneg %p182
        %p440 = pneg %p211
        %p441 = pneg %p208
        %s442 = sand.u32 %s198, 1
        %s443 = scalar_lea.sflag [#allocation4], %s442
        %s444 = sand.u32 %s198, 1
        %s445 = smul.addr %s444, 512
        %s446 = scalar_lea.vmem [#allocation11], %s445
        %p447 = pneg %p237
        %p448 = pneg %p234
        %s449 = sand.u32 %s224, 1
        %s450 = scalar_lea.sflag [#allocation13], %s449
        %s451 = sand.u32 %s224, 1
        %s452 = smul.addr %s451, 16
        %s453 = scalar_lea.vmem [#allocation12], %s452
        %s454 = smul.u32 2, %s33
        %s455 = smul.u32 2, %s33
        %s456 = smul.u32 2, %s33
        %s457 = smul.u32 2, %s33
        %v458 = vld [vmem:[%s395] sm:$0xff]
        %v459 = vld [vmem:[%s395 + $0x8] sm:$0xff]
        loop: start=0, step=1, limit=16
        $region69: #{tpu_custom_call.1} parent=47 // loop_pre_header
          _
        $region70: #{tpu_custom_call.1} parent=47 // loop_header
          %s461 = sphi 0, %s465
          %p462 = scmp.ge.s32.totalorder %s461, 16
          %v466 = vphi %v458, %v1012
          %v467 = vphi %v459, %v1015
        $region71: #{tpu_custom_call.1} parent=47 // loop_header_branch
          %464 = sbr.rel (%p462) target = $region75
        $region72: #{tpu_custom_call.1} parent=47 // loop_body
          %s468 = smul.u32 %s461, 4
          %s469 = smul.addr %s468, 4
          %s470 = scalar_lea.vmem %s385, %s469 [#allocation2]
          %v471 = vld [vmem:[%s470] sm:$0xff]
          %v472 = vld [vmem:[%s470 + $0x8] sm:$0xff]
          %v473 = vld [vmem:[#allocation7] sm:$0xff]
          %v474 = vld [vmem:[#allocation7 + $0x8] sm:$0xf]
          %v475 = vld [vmem:[#allocation7 + $0xc] sm:$0xff]
          %v476 = vld [vmem:[#allocation7 + $0x14] sm:$0xf]
          %v477 = vld [vmem:[#allocation7 + $0x18] sm:$0xff]
          %v478 = vld [vmem:[#allocation7 + $0x20] sm:$0xf]
          %v479 = vld [vmem:[#allocation7 + $0x24] sm:$0xff]
          %v480 = vld [vmem:[#allocation7 + $0x2c] sm:$0xf]
          %v481 = vld [vmem:[#allocation7 + $0x30] sm:$0xff]
          %v482 = vld [vmem:[#allocation7 + $0x38] sm:$0xf]
          %v483 = vld [vmem:[#allocation7 + $0x3c] sm:$0xff]
          %v484 = vld [vmem:[#allocation7 + $0x44] sm:$0xf]
          %v485 = vld [vmem:[#allocation7 + $0x48] sm:$0xff]
          %v486 = vld [vmem:[#allocation7 + $0x50] sm:$0xf]
          %v487 = vld [vmem:[#allocation7 + $0x54] sm:$0xff]
          %v488 = vld [vmem:[#allocation7 + $0x5c] sm:$0xf]
          %v489 = vld [vmem:[#allocation7 + $0x60] sm:$0xff]
          %v490 = vld [vmem:[#allocation7 + $0x68] sm:$0xf]
          %v491 = vld [vmem:[#allocation7 + $0x6c] sm:$0xff]
          %v492 = vld [vmem:[#allocation7 + $0x74] sm:$0xf]
          %v493 = vld [vmem:[#allocation7 + $0x78] sm:$0xff]
          %v494 = vld [vmem:[#allocation7 + $0x80] sm:$0xf]
          %v495 = vld [vmem:[#allocation7 + $0x84] sm:$0xff]
          %v496 = vld [vmem:[#allocation7 + $0x8c] sm:$0xf]
          %v497 = vld [vmem:[#allocation7 + $0x90] sm:$0xff]
          %v498 = vld [vmem:[#allocation7 + $0x98] sm:$0xf]
          %v499 = vld [vmem:[#allocation7 + $0x9c] sm:$0xff]
          %v500 = vld [vmem:[#allocation7 + $0xa4] sm:$0xf]
          %v501 = vld [vmem:[#allocation7 + $0xa8] sm:$0xff]
          %v502 = vld [vmem:[#allocation7 + $0xb0] sm:$0xf]
          %v503 = vld [vmem:[#allocation7 + $0xb4] sm:$0xff]
          %v504 = vld [vmem:[#allocation7 + $0xbc] sm:$0xf]
          %v505 = vld [vmem:[#allocation7 + $0xc0] sm:$0xff]
          %v506 = vld [vmem:[#allocation7 + $0xc8] sm:$0xf]
          %v507 = vld [vmem:[#allocation7 + $0xcc] sm:$0xff]
          %v508 = vld [vmem:[#allocation7 + $0xd4] sm:$0xf]
          %v509 = vld [vmem:[#allocation7 + $0xd8] sm:$0xff]
          %v510 = vld [vmem:[#allocation7 + $0xe0] sm:$0xf]
          %v511 = vld [vmem:[#allocation7 + $0xe4] sm:$0xff]
          %v512 = vld [vmem:[#allocation7 + $0xec] sm:$0xf]
          %v513 = vld [vmem:[#allocation7 + $0xf0] sm:$0xff]
          %v514 = vld [vmem:[#allocation7 + $0xf8] sm:$0xf]
          %v515 = vld [vmem:[#allocation7 + $0xfc] sm:$0xff]
          %v516 = vld [vmem:[#allocation7 + $0x104] sm:$0xf]
          %v517 = vld [vmem:[#allocation7 + $0x108] sm:$0xff]
          %v518 = vld [vmem:[#allocation7 + $0x110] sm:$0xf]
          %v519 = vld [vmem:[#allocation7 + $0x114] sm:$0xff]
          %v520 = vld [vmem:[#allocation7 + $0x11c] sm:$0xf]
          %v521 = vld [vmem:[#allocation7 + $0x120] sm:$0xff]
          %v522 = vld [vmem:[#allocation7 + $0x128] sm:$0xf]
          %v523 = vld [vmem:[#allocation7 + $0x12c] sm:$0xff]
          %v524 = vld [vmem:[#allocation7 + $0x134] sm:$0xf]
          %v525 = vld [vmem:[#allocation7 + $0x138] sm:$0xff]
          %v526 = vld [vmem:[#allocation7 + $0x140] sm:$0xf]
          %v527 = vld [vmem:[#allocation7 + $0x144] sm:$0xff]
          %v528 = vld [vmem:[#allocation7 + $0x14c] sm:$0xf]
          %v529 = vld [vmem:[#allocation7 + $0x150] sm:$0xff]
          %v530 = vld [vmem:[#allocation7 + $0x158] sm:$0xf]
          %v531 = vld [vmem:[#allocation7 + $0x15c] sm:$0xff]
          %v532 = vld [vmem:[#allocation7 + $0x164] sm:$0xf]
          %v533 = vld [vmem:[#allocation7 + $0x168] sm:$0xff]
          %v534 = vld [vmem:[#allocation7 + $0x170] sm:$0xf]
          %v535 = vld [vmem:[#allocation7 + $0x174] sm:$0xff]
          %v536 = vld [vmem:[#allocation7 + $0x17c] sm:$0xf]
          %v537 = vld [vmem:[#allocation8] sm:$0xff]
          %v538 = vld [vmem:[#allocation8 + $0x8] sm:$0xff]
          %v539 = vld [vmem:[#allocation8 + $0x10] sm:$0xff]
          %v540 = vld [vmem:[#allocation8 + $0x18] sm:$0xff]
          %v541 = vld [vmem:[#allocation8 + $0x20] sm:$0xff]
          %v542 = vld [vmem:[#allocation8 + $0x28] sm:$0xff]
          %v543 = vld [vmem:[#allocation8 + $0x30] sm:$0xff]
          %v544 = vld [vmem:[#allocation8 + $0x38] sm:$0xff]
          %v545 = vld [vmem:[#allocation8 + $0x40] sm:$0xff]
          %v546 = vld [vmem:[#allocation8 + $0x48] sm:$0xff]
          %v547 = vld [vmem:[#allocation8 + $0x50] sm:$0xff]
          %v548 = vld [vmem:[#allocation8 + $0x58] sm:$0xff]
          %v549 = vld [vmem:[#allocation8 + $0x60] sm:$0xff]
          %v550 = vld [vmem:[#allocation8 + $0x68] sm:$0xff]
          %v551 = vld [vmem:[#allocation8 + $0x70] sm:$0xff]
          %v552 = vld [vmem:[#allocation8 + $0x78] sm:$0xff]
          %v553 = vld [vmem:[#allocation8 + $0x80] sm:$0xff]
          %v554 = vld [vmem:[#allocation8 + $0x88] sm:$0xff]
          %v555 = vld [vmem:[#allocation8 + $0x90] sm:$0xff]
          %v556 = vld [vmem:[#allocation8 + $0x98] sm:$0xff]
          %v557 = vld [vmem:[#allocation8 + $0xa0] sm:$0xff]
          %v558 = vld [vmem:[#allocation8 + $0xa8] sm:$0xff]
          %v559 = vld [vmem:[#allocation8 + $0xb0] sm:$0xff]
          %v560 = vld [vmem:[#allocation8 + $0xb8] sm:$0xff]
          %v561 = vld [vmem:[#allocation8 + $0xc0] sm:$0xff]
          %v562 = vld [vmem:[#allocation8 + $0xc8] sm:$0xff]
          %v563 = vld [vmem:[#allocation8 + $0xd0] sm:$0xff]
          %v564 = vld [vmem:[#allocation8 + $0xd8] sm:$0xff]
          %v565 = vld [vmem:[#allocation8 + $0xe0] sm:$0xff]
          %v566 = vld [vmem:[#allocation8 + $0xe8] sm:$0xff]
          %v567 = vld [vmem:[#allocation8 + $0xf0] sm:$0xff]
          %v568 = vld [vmem:[#allocation8 + $0xf8] sm:$0xff]
          %v569 = vld [vmem:[#allocation8 + $0x100] sm:$0xff]
          %v570 = vld [vmem:[#allocation8 + $0x108] sm:$0xff]
          %v571 = vld [vmem:[#allocation8 + $0x110] sm:$0xff]
          %v572 = vld [vmem:[#allocation8 + $0x118] sm:$0xff]
          %v573 = vld [vmem:[#allocation8 + $0x120] sm:$0xff]
          %v574 = vld [vmem:[#allocation8 + $0x128] sm:$0xff]
          %v575 = vld [vmem:[#allocation8 + $0x130] sm:$0xff]
          %v576 = vld [vmem:[#allocation8 + $0x138] sm:$0xff]
          %v577 = vld [vmem:[#allocation8 + $0x140] sm:$0xff]
          %v578 = vld [vmem:[#allocation8 + $0x148] sm:$0xff]
          %v579 = vld [vmem:[#allocation8 + $0x150] sm:$0xff]
          %v580 = vld [vmem:[#allocation8 + $0x158] sm:$0xff]
          %v581 = vld [vmem:[#allocation8 + $0x160] sm:$0xff]
          %v582 = vld [vmem:[#allocation8 + $0x168] sm:$0xff]
          %v583 = vld [vmem:[#allocation8 + $0x170] sm:$0xff]
          %v584 = vld [vmem:[#allocation8 + $0x178] sm:$0xff]
          %585 = vmatpush.msra.mxu0 %v582
          %586 = vmatpush.msra.mxu0 %v579
          %587 = vmatpush.msra.mxu0 %v576
          %588 = vmatpush.msra.mxu0 %v573
          %589 = vmatpush.msra.mxu0 %v570
          %590 = vmatpush.msra.mxu0 %v567
          %591 = vmatpush.msra.mxu0 %v564
          %592 = vmatpush.msra.mxu0 %v561
          %593 = vmatpush.msra.mxu0 %v558
          %594 = vmatpush.msra.mxu0 %v555
          %595 = vmatpush.msra.mxu0 %v552
          %596 = vmatpush.msra.mxu0 %v549
          %597 = vmatpush.msra.mxu0 %v546
          %598 = vmatpush.msra.mxu0 %v543
          %599 = vmatpush.msra.mxu0 %v540
          %600 = vmatpush.msra.mxu0 %v537
          %601 = vmatmul.f32.gmra.mxu0 %v466
          %v602 = vpop.f32.mrf.mxu0
          %v603 = vadd.f32 0.0, %v602
          %604 = vmatmul.f32.gmra.mxu0 %v467
          %v605 = vpop.f32.mrf.mxu0
          %v606 = vadd.f32 0.0, %v605
          %607 = vdwg.mxu0
          %608 = vmatpush.msra.mxu0 %v583
          %609 = vmatpush.msra.mxu0 %v580
          %610 = vmatpush.msra.mxu0 %v577
          %611 = vmatpush.msra.mxu0 %v574
          %612 = vmatpush.msra.mxu0 %v571
          %613 = vmatpush.msra.mxu0 %v568
          %614 = vmatpush.msra.mxu0 %v565
          %615 = vmatpush.msra.mxu0 %v562
          %616 = vmatpush.msra.mxu0 %v559
          %617 = vmatpush.msra.mxu0 %v556
          %618 = vmatpush.msra.mxu0 %v553
          %619 = vmatpush.msra.mxu0 %v550
          %620 = vmatpush.msra.mxu0 %v547
          %621 = vmatpush.msra.mxu0 %v544
          %622 = vmatpush.msra.mxu0 %v541
          %623 = vmatpush.msra.mxu0 %v538
          %624 = vmatmul.f32.gmra.mxu0 %v466
          %v625 = vpop.f32.mrf.mxu0
          %v626 = vadd.f32 0.0, %v625
          %627 = vmatmul.f32.gmra.mxu0 %v467
          %v628 = vpop.f32.mrf.mxu0
          %v629 = vadd.f32 0.0, %v628
          %630 = vdwg.mxu0
          %631 = vmatpush.msra.mxu0 %v584
          %632 = vmatpush.msra.mxu0 %v581
          %633 = vmatpush.msra.mxu0 %v578
          %634 = vmatpush.msra.mxu0 %v575
          %635 = vmatpush.msra.mxu0 %v572
          %636 = vmatpush.msra.mxu0 %v569
          %637 = vmatpush.msra.mxu0 %v566
          %638 = vmatpush.msra.mxu0 %v563
          %639 = vmatpush.msra.mxu0 %v560
          %640 = vmatpush.msra.mxu0 %v557
          %641 = vmatpush.msra.mxu0 %v554
          %642 = vmatpush.msra.mxu0 %v551
          %643 = vmatpush.msra.mxu0 %v548
          %644 = vmatpush.msra.mxu0 %v545
          %645 = vmatpush.msra.mxu0 %v542
          %646 = vmatpush.msra.mxu0 %v539
          %647 = vmatmul.f32.gmra.mxu0 %v466
          %v648 = vpop.f32.mrf.mxu0
          %v649 = vadd.f32 0.0, %v648
          %650 = vmatmul.f32.gmra.mxu0 %v467
          %v651 = vpop.f32.mrf.mxu0
          %v652 = vadd.f32 0.0, %v651
          %653 = vdwg.mxu0
          %v656 = vunpack.c.l.b16 %v471
          %v657 = vunpack.c.h.b16 %v471
          %v658 = vunpack.c.l.b16 %v472
          %v659 = vunpack.c.h.b16 %v472
          %v660 = vpack.c.b16 %v658, %v656
          %v661 = vpack.c.b16 %v659, %v657
          %v728 = vunpack.c.l.b16 %v473
          %v729 = vunpack.c.h.b16 %v473
          %v730 = vunpack.c.l.b16 %v474
          %v731 = vunpack.c.l.b16 %v475
          %v732 = vunpack.c.h.b16 %v475
          %v733 = vunpack.c.l.b16 %v476
          %v734 = vunpack.c.l.b16 %v477
          %v735 = vunpack.c.h.b16 %v477
          %v736 = vunpack.c.l.b16 %v478
          %v737 = vunpack.c.l.b16 %v479
          %v738 = vunpack.c.h.b16 %v479
          %v739 = vunpack.c.l.b16 %v480
          %v740 = vunpack.c.l.b16 %v481
          %v741 = vunpack.c.h.b16 %v481
          %v742 = vunpack.c.l.b16 %v482
          %v743 = vunpack.c.l.b16 %v483
          %v744 = vunpack.c.h.b16 %v483
          %v745 = vunpack.c.l.b16 %v484
          %v746 = vunpack.c.l.b16 %v485
          %v747 = vunpack.c.h.b16 %v485
          %v748 = vunpack.c.l.b16 %v486
          %v749 = vunpack.c.l.b16 %v487
          %v750 = vunpack.c.h.b16 %v487
          %v751 = vunpack.c.l.b16 %v488
          %v752 = vunpack.c.l.b16 %v489
          %v753 = vunpack.c.h.b16 %v489
          %v754 = vunpack.c.l.b16 %v490
          %v755 = vunpack.c.l.b16 %v491
          %v756 = vunpack.c.h.b16 %v491
          %v757 = vunpack.c.l.b16 %v492
          %v758 = vunpack.c.l.b16 %v493
          %v759 = vunpack.c.h.b16 %v493
          %v760 = vunpack.c.l.b16 %v494
          %v761 = vunpack.c.l.b16 %v495
          %v762 = vunpack.c.h.b16 %v495
          %v763 = vunpack.c.l.b16 %v496
          %v764 = vunpack.c.l.b16 %v497
          %v765 = vunpack.c.h.b16 %v497
          %v766 = vunpack.c.l.b16 %v498
          %v767 = vunpack.c.l.b16 %v499
          %v768 = vunpack.c.h.b16 %v499
          %v769 = vunpack.c.l.b16 %v500
          %v770 = vunpack.c.l.b16 %v501
          %v771 = vunpack.c.h.b16 %v501
          %v772 = vunpack.c.l.b16 %v502
          %v773 = vunpack.c.l.b16 %v503
          %v774 = vunpack.c.h.b16 %v503
          %v775 = vunpack.c.l.b16 %v504
          %v776 = vunpack.c.l.b16 %v505
          %v777 = vunpack.c.h.b16 %v505
          %v778 = vunpack.c.l.b16 %v506
          %v779 = vunpack.c.l.b16 %v507
          %v780 = vunpack.c.h.b16 %v507
          %v781 = vunpack.c.l.b16 %v508
          %v782 = vunpack.c.l.b16 %v509
          %v783 = vunpack.c.h.b16 %v509
          %v784 = vunpack.c.l.b16 %v510
          %v785 = vunpack.c.l.b16 %v511
          %v786 = vunpack.c.h.b16 %v511
          %v787 = vunpack.c.l.b16 %v512
          %v788 = vunpack.c.l.b16 %v513
          %v789 = vunpack.c.h.b16 %v513
          %v790 = vunpack.c.l.b16 %v514
          %v791 = vunpack.c.l.b16 %v515
          %v792 = vunpack.c.h.b16 %v515
          %v793 = vunpack.c.l.b16 %v516
          %v794 = vunpack.c.l.b16 %v517
          %v795 = vunpack.c.h.b16 %v517
          %v796 = vunpack.c.l.b16 %v518
          %v797 = vunpack.c.l.b16 %v519
          %v798 = vunpack.c.h.b16 %v519
          %v799 = vunpack.c.l.b16 %v520
          %v800 = vunpack.c.l.b16 %v521
          %v801 = vunpack.c.h.b16 %v521
          %v802 = vunpack.c.l.b16 %v522
          %v803 = vunpack.c.l.b16 %v523
          %v804 = vunpack.c.h.b16 %v523
          %v805 = vunpack.c.l.b16 %v524
          %v806 = vunpack.c.l.b16 %v525
          %v807 = vunpack.c.h.b16 %v525
          %v808 = vunpack.c.l.b16 %v526
          %v809 = vunpack.c.l.b16 %v527
          %v810 = vunpack.c.h.b16 %v527
          %v811 = vunpack.c.l.b16 %v528
          %v812 = vunpack.c.l.b16 %v529
          %v813 = vunpack.c.h.b16 %v529
          %v814 = vunpack.c.l.b16 %v530
          %v815 = vunpack.c.l.b16 %v531
          %v816 = vunpack.c.h.b16 %v531
          %v817 = vunpack.c.l.b16 %v532
          %v818 = vunpack.c.l.b16 %v533
          %v819 = vunpack.c.h.b16 %v533
          %v820 = vunpack.c.l.b16 %v534
          %v821 = vunpack.c.l.b16 %v535
          %v822 = vunpack.c.h.b16 %v535
          %v823 = vunpack.c.l.b16 %v536
          %v824 = vpack.c.b16 %v731, %v728
          %v825 = vpack.c.b16 %v732, %v729
          %v826 = vpack.c.b16 %v733, %v730
          %v827 = vpack.c.b16 %v737, %v734
          %v828 = vpack.c.b16 %v738, %v735
          %v829 = vpack.c.b16 %v739, %v736
          %v830 = vpack.c.b16 %v743, %v740
          %v831 = vpack.c.b16 %v744, %v741
          %v832 = vpack.c.b16 %v745, %v742
          %v833 = vpack.c.b16 %v749, %v746
          %v834 = vpack.c.b16 %v750, %v747
          %v835 = vpack.c.b16 %v751, %v748
          %v836 = vpack.c.b16 %v755, %v752
          %v837 = vpack.c.b16 %v756, %v753
          %v838 = vpack.c.b16 %v757, %v754
          %v839 = vpack.c.b16 %v761, %v758
          %v840 = vpack.c.b16 %v762, %v759
          %v841 = vpack.c.b16 %v763, %v760
          %v842 = vpack.c.b16 %v767, %v764
          %v843 = vpack.c.b16 %v768, %v765
          %v844 = vpack.c.b16 %v769, %v766
          %v845 = vpack.c.b16 %v773, %v770
          %v846 = vpack.c.b16 %v774, %v771
          %v847 = vpack.c.b16 %v775, %v772
          %v848 = vpack.c.b16 %v779, %v776
          %v849 = vpack.c.b16 %v780, %v777
          %v850 = vpack.c.b16 %v781, %v778
          %v851 = vpack.c.b16 %v785, %v782
          %v852 = vpack.c.b16 %v786, %v783
          %v853 = vpack.c.b16 %v787, %v784
          %v854 = vpack.c.b16 %v791, %v788
          %v855 = vpack.c.b16 %v792, %v789
          %v856 = vpack.c.b16 %v793, %v790
          %v857 = vpack.c.b16 %v797, %v794
          %v858 = vpack.c.b16 %v798, %v795
          %v859 = vpack.c.b16 %v799, %v796
          %v860 = vpack.c.b16 %v803, %v800
          %v861 = vpack.c.b16 %v804, %v801
          %v862 = vpack.c.b16 %v805, %v802
          %v863 = vpack.c.b16 %v809, %v806
          %v864 = vpack.c.b16 %v810, %v807
          %v865 = vpack.c.b16 %v811, %v808
          %v866 = vpack.c.b16 %v815, %v812
          %v867 = vpack.c.b16 %v816, %v813
          %v868 = vpack.c.b16 %v817, %v814
          %v869 = vpack.c.b16 %v821, %v818
          %v870 = vpack.c.b16 %v822, %v819
          %v871 = vpack.c.b16 %v823, %v820
          %920 = vmatpush.bf16.msra.mxu0 %v845
          %921 = vmatpush.bf16.msra.mxu0 %v842
          %922 = vmatpush.bf16.msra.mxu0 %v839
          %923 = vmatpush.bf16.msra.mxu0 %v836
          %924 = vmatpush.bf16.msra.mxu0 %v833
          %925 = vmatpush.bf16.msra.mxu0 %v830
          %926 = vmatpush.bf16.msra.mxu0 %v827
          %927 = vmatpush.bf16.msra.mxu0 %v824
          %928 = vmatmul.bf16.gmra.mxu0 %v660
          %v929 = vpop.f32.mrf.mxu0
          %v930 = vadd.f32 %v603, %v929
          %v931 = vpop.f32.mrf.mxu0
          %v932 = vadd.f32 %v606, %v931
          %933 = vdwg.mxu0
          %934 = vmatpush.bf16.msra.mxu0 %v869
          %935 = vmatpush.bf16.msra.mxu0 %v866
          %936 = vmatpush.bf16.msra.mxu0 %v863
          %937 = vmatpush.bf16.msra.mxu0 %v860
          %938 = vmatpush.bf16.msra.mxu0 %v857
          %939 = vmatpush.bf16.msra.mxu0 %v854
          %940 = vmatpush.bf16.msra.mxu0 %v851
          %941 = vmatpush.bf16.msra.mxu0 %v848
          %942 = vmatmul.bf16.gmra.mxu0 %v661
          %v943 = vpop.f32.mrf.mxu0
          %v944 = vadd.f32 %v930, %v943
          %v945 = vpop.f32.mrf.mxu0
          %v946 = vadd.f32 %v932, %v945
          %947 = vdwg.mxu0
          %948 = vmatpush.bf16.msra.mxu0 %v846
          %949 = vmatpush.bf16.msra.mxu0 %v843
          %950 = vmatpush.bf16.msra.mxu0 %v840
          %951 = vmatpush.bf16.msra.mxu0 %v837
          %952 = vmatpush.bf16.msra.mxu0 %v834
          %953 = vmatpush.bf16.msra.mxu0 %v831
          %954 = vmatpush.bf16.msra.mxu0 %v828
          %955 = vmatpush.bf16.msra.mxu0 %v825
          %956 = vmatmul.bf16.gmra.mxu0 %v660
          %v957 = vpop.f32.mrf.mxu0
          %v958 = vadd.f32 %v626, %v957
          %v959 = vpop.f32.mrf.mxu0
          %v960 = vadd.f32 %v629, %v959
          %961 = vdwg.mxu0
          %962 = vmatpush.bf16.msra.mxu0 %v870
          %963 = vmatpush.bf16.msra.mxu0 %v867
          %964 = vmatpush.bf16.msra.mxu0 %v864
          %965 = vmatpush.bf16.msra.mxu0 %v861
          %966 = vmatpush.bf16.msra.mxu0 %v858
          %967 = vmatpush.bf16.msra.mxu0 %v855
          %968 = vmatpush.bf16.msra.mxu0 %v852
          %969 = vmatpush.bf16.msra.mxu0 %v849
          %970 = vmatmul.bf16.gmra.mxu0 %v661
          %v971 = vpop.f32.mrf.mxu0
          %v972 = vadd.f32 %v958, %v971
          %v973 = vpop.f32.mrf.mxu0
          %v974 = vadd.f32 %v960, %v973
          %975 = vdwg.mxu0
          %976 = vmatpush.bf16.msra.mxu0 %v847
          %977 = vmatpush.bf16.msra.mxu0 %v844
          %978 = vmatpush.bf16.msra.mxu0 %v841
          %979 = vmatpush.bf16.msra.mxu0 %v838
          %980 = vmatpush.bf16.msra.mxu0 %v835
          %981 = vmatpush.bf16.msra.mxu0 %v832
          %982 = vmatpush.bf16.msra.mxu0 %v829
          %983 = vmatpush.bf16.msra.mxu0 %v826
          %984 = vmatmul.bf16.gmra.mxu0 %v660
          %v985 = vpop.f32.mrf.mxu0
          %v986 = vadd.f32 %v649, %v985
          %v987 = vpop.f32.mrf.mxu0
          %v988 = vadd.f32 %v652, %v987
          %989 = vdwg.mxu0
          %990 = vmatpush.bf16.msra.mxu0 %v871
          %991 = vmatpush.bf16.msra.mxu0 %v868
          %992 = vmatpush.bf16.msra.mxu0 %v865
          %993 = vmatpush.bf16.msra.mxu0 %v862
          %994 = vmatpush.bf16.msra.mxu0 %v859
          %995 = vmatpush.bf16.msra.mxu0 %v856
          %996 = vmatpush.bf16.msra.mxu0 %v853
          %997 = vmatpush.bf16.msra.mxu0 %v850
          %998 = vmatmul.bf16.gmra.mxu0 %v661
          %v999 = vpop.f32.mrf.mxu0
          %v1000 = vadd.f32 %v986, %v999
          %v1001 = vpop.f32.mrf.mxu0
          %v1002 = vadd.f32 %v988, %v1001
          %1003 = vdwg.mxu0
          %v1004 = vld [vmem:[%s4] sm:$0x7]
          %v1006 = vperm.slane %v1004, 0
          %v1007 = vperm.slane %v1004, 1
          %v1008 = vperm.slane %v1004, 2
          %v1012 = vadd.f32 %v944, %v1006
          %v1013 = vadd.f32 %v972, %v1007
          %v1014 = vadd.f32 %v1000, %v1008
          %v1015 = vadd.f32 %v946, %v1006
          %v1016 = vadd.f32 %v974, %v1007
          %v1017 = vadd.f32 %v1002, %v1008
          %v1018 = vpack.c.bf16 %v1015, %v1012
          %v1019 = vpack.c.bf16 %v1016, %v1013
          %v1020 = vpack.c.bf16 %v1017, %v1014
          %v1021 = vld [vmem:[#allocation10] sm:$0xff]
          %v1022 = vld [vmem:[#allocation10 + $0x8] sm:$0xff]
          %v1023 = vld [vmem:[#allocation10 + $0x10] sm:$0xff]
          %v1024 = vld [vmem:[#allocation10 + $0x18] sm:$0xff]
          %v1025 = vld [vmem:[#allocation10 + $0x20] sm:$0xff]
          %v1026 = vld [vmem:[#allocation10 + $0x28] sm:$0xff]
          %v1027 = vld [vmem:[#allocation10 + $0x30] sm:$0xff]
          %v1028 = vld [vmem:[#allocation10 + $0x38] sm:$0xff]
          %v1029 = vld [vmem:[#allocation10 + $0x40] sm:$0xff]
          %v1030 = vld [vmem:[#allocation10 + $0x48] sm:$0xff]
          %v1031 = vld [vmem:[#allocation10 + $0x50] sm:$0xff]
          %v1032 = vld [vmem:[#allocation10 + $0x58] sm:$0xff]
          %v1033 = vld [vmem:[#allocation10 + $0x60] sm:$0xff]
          %v1034 = vld [vmem:[#allocation10 + $0x68] sm:$0xff]
          %v1035 = vld [vmem:[#allocation10 + $0x70] sm:$0xff]
          %v1036 = vld [vmem:[#allocation10 + $0x78] sm:$0xff]
          %v1037 = vld [vmem:[#allocation10 + $0x80] sm:$0xff]
          %v1038 = vld [vmem:[#allocation10 + $0x88] sm:$0xff]
          %v1039 = vld [vmem:[#allocation10 + $0x90] sm:$0xff]
          %v1040 = vld [vmem:[#allocation10 + $0x98] sm:$0xff]
          %v1041 = vld [vmem:[#allocation10 + $0xa0] sm:$0xff]
          %v1042 = vld [vmem:[#allocation10 + $0xa8] sm:$0xff]
          %v1043 = vld [vmem:[#allocation10 + $0xb0] sm:$0xff]
          %v1044 = vld [vmem:[#allocation10 + $0xb8] sm:$0xff]
          %v1045 = vld [vmem:[#allocation10 + $0xc0] sm:$0xff]
          %v1046 = vld [vmem:[#allocation10 + $0xc8] sm:$0xff]
          %v1047 = vld [vmem:[#allocation10 + $0xd0] sm:$0xff]
          %v1048 = vld [vmem:[#allocation10 + $0xd8] sm:$0xff]
          %v1049 = vld [vmem:[#allocation10 + $0xe0] sm:$0xff]
          %v1050 = vld [vmem:[#allocation10 + $0xe8] sm:$0xff]
          %v1051 = vld [vmem:[#allocation10 + $0xf0] sm:$0xff]
          %v1052 = vld [vmem:[#allocation10 + $0xf8] sm:$0xff]
          %v1053 = vld [vmem:[#allocation10 + $0x100] sm:$0xff]
          %v1054 = vld [vmem:[#allocation10 + $0x108] sm:$0xff]
          %v1055 = vld [vmem:[#allocation10 + $0x110] sm:$0xff]
          %v1056 = vld [vmem:[#allocation10 + $0x118] sm:$0xff]
          %v1057 = vld [vmem:[#allocation10 + $0x120] sm:$0xff]
          %v1058 = vld [vmem:[#allocation10 + $0x128] sm:$0xff]
          %v1059 = vld [vmem:[#allocation10 + $0x130] sm:$0xff]
          %v1060 = vld [vmem:[#allocation10 + $0x138] sm:$0xff]
          %v1061 = vld [vmem:[#allocation10 + $0x140] sm:$0xff]
          %v1062 = vld [vmem:[#allocation10 + $0x148] sm:$0xff]
          %v1063 = vld [vmem:[#allocation10 + $0x150] sm:$0xff]
          %v1064 = vld [vmem:[#allocation10 + $0x158] sm:$0xff]
          %v1065 = vld [vmem:[#allocation10 + $0x160] sm:$0xff]
          %v1066 = vld [vmem:[#allocation10 + $0x168] sm:$0xff]
          %v1067 = vld [vmem:[#allocation10 + $0x170] sm:$0xff]
          %v1068 = vld [vmem:[#allocation10 + $0x178] sm:$0xff]
          %v1069 = vld [vmem:[%s6] sm:$0x3]
          %v1071 = vperm.slane %v1069, 0
          %v1072 = vperm.slane %v1069, 1
          %v1123 = vunpack.c.l.b16 %v1021
          %v1124 = vunpack.c.h.b16 %v1021
          %v1125 = vunpack.c.l.b16 %v1022
          %v1126 = vunpack.c.h.b16 %v1022
          %v1127 = vunpack.c.l.b16 %v1023
          %v1128 = vunpack.c.h.b16 %v1023
          %v1129 = vunpack.c.l.b16 %v1024
          %v1130 = vunpack.c.h.b16 %v1024
          %v1131 = vunpack.c.l.b16 %v1025
          %v1132 = vunpack.c.h.b16 %v1025
          %v1133 = vunpack.c.l.b16 %v1026
          %v1134 = vunpack.c.h.b16 %v1026
          %v1135 = vunpack.c.l.b16 %v1027
          %v1136 = vunpack.c.h.b16 %v1027
          %v1137 = vunpack.c.l.b16 %v1028
          %v1138 = vunpack.c.h.b16 %v1028
          %v1139 = vunpack.c.l.b16 %v1029
          %v1140 = vunpack.c.h.b16 %v1029
          %v1141 = vunpack.c.l.b16 %v1030
          %v1142 = vunpack.c.h.b16 %v1030
          %v1143 = vunpack.c.l.b16 %v1031
          %v1144 = vunpack.c.h.b16 %v1031
          %v1145 = vunpack.c.l.b16 %v1032
          %v1146 = vunpack.c.h.b16 %v1032
          %v1147 = vunpack.c.l.b16 %v1033
          %v1148 = vunpack.c.h.b16 %v1033
          %v1149 = vunpack.c.l.b16 %v1034
          %v1150 = vunpack.c.h.b16 %v1034
          %v1151 = vunpack.c.l.b16 %v1035
          %v1152 = vunpack.c.h.b16 %v1035
          %v1153 = vunpack.c.l.b16 %v1036
          %v1154 = vunpack.c.h.b16 %v1036
          %v1155 = vunpack.c.l.b16 %v1037
          %v1156 = vunpack.c.h.b16 %v1037
          %v1157 = vunpack.c.l.b16 %v1038
          %v1158 = vunpack.c.h.b16 %v1038
          %v1159 = vunpack.c.l.b16 %v1039
          %v1160 = vunpack.c.h.b16 %v1039
          %v1161 = vunpack.c.l.b16 %v1040
          %v1162 = vunpack.c.h.b16 %v1040
          %v1163 = vunpack.c.l.b16 %v1041
          %v1164 = vunpack.c.h.b16 %v1041
          %v1165 = vunpack.c.l.b16 %v1042
          %v1166 = vunpack.c.h.b16 %v1042
          %v1167 = vunpack.c.l.b16 %v1043
          %v1168 = vunpack.c.h.b16 %v1043
          %v1169 = vunpack.c.l.b16 %v1044
          %v1170 = vunpack.c.h.b16 %v1044
          %v1171 = vunpack.c.l.b16 %v1045
          %v1172 = vunpack.c.h.b16 %v1045
          %v1173 = vunpack.c.l.b16 %v1046
          %v1174 = vunpack.c.h.b16 %v1046
          %v1175 = vunpack.c.l.b16 %v1047
          %v1176 = vunpack.c.h.b16 %v1047
          %v1177 = vunpack.c.l.b16 %v1048
          %v1178 = vunpack.c.h.b16 %v1048
          %v1179 = vunpack.c.l.b16 %v1049
          %v1180 = vunpack.c.h.b16 %v1049
          %v1181 = vunpack.c.l.b16 %v1050
          %v1182 = vunpack.c.h.b16 %v1050
          %v1183 = vunpack.c.l.b16 %v1051
          %v1184 = vunpack.c.h.b16 %v1051
          %v1185 = vunpack.c.l.b16 %v1052
          %v1186 = vunpack.c.h.b16 %v1052
          %v1187 = vunpack.c.l.b16 %v1053
          %v1188 = vunpack.c.h.b16 %v1053
          %v1189 = vunpack.c.l.b16 %v1054
          %v1190 = vunpack.c.h.b16 %v1054
          %v1191 = vunpack.c.l.b16 %v1055
          %v1192 = vunpack.c.h.b16 %v1055
          %v1193 = vunpack.c.l.b16 %v1056
          %v1194 = vunpack.c.h.b16 %v1056
          %v1195 = vunpack.c.l.b16 %v1057
          %v1196 = vunpack.c.h.b16 %v1057
          %v1197 = vunpack.c.l.b16 %v1058
          %v1198 = vunpack.c.h.b16 %v1058
          %v1199 = vunpack.c.l.b16 %v1059
          %v1200 = vunpack.c.h.b16 %v1059
          %v1201 = vunpack.c.l.b16 %v1060
          %v1202 = vunpack.c.h.b16 %v1060
          %v1203 = vunpack.c.l.b16 %v1061
          %v1204 = vunpack.c.h.b16 %v1061
          %v1205 = vunpack.c.l.b16 %v1062
          %v1206 = vunpack.c.h.b16 %v1062
          %v1207 = vunpack.c.l.b16 %v1063
          %v1208 = vunpack.c.h.b16 %v1063
          %v1209 = vunpack.c.l.b16 %v1064
          %v1210 = vunpack.c.h.b16 %v1064
          %v1211 = vunpack.c.l.b16 %v1065
          %v1212 = vunpack.c.h.b16 %v1065
          %v1213 = vunpack.c.l.b16 %v1066
          %v1214 = vunpack.c.h.b16 %v1066
          %v1215 = vunpack.c.l.b16 %v1067
          %v1216 = vunpack.c.h.b16 %v1067
          %v1217 = vunpack.c.l.b16 %v1068
          %v1218 = vunpack.c.h.b16 %v1068
          %v1219 = vpack.c.b16 %v1125, %v1123
          %v1220 = vpack.c.b16 %v1126, %v1124
          %v1221 = vpack.c.b16 %v1129, %v1127
          %v1222 = vpack.c.b16 %v1130, %v1128
          %v1223 = vpack.c.b16 %v1133, %v1131
          %v1224 = vpack.c.b16 %v1134, %v1132
          %v1225 = vpack.c.b16 %v1137, %v1135
          %v1226 = vpack.c.b16 %v1138, %v1136
          %v1227 = vpack.c.b16 %v1141, %v1139
          %v1228 = vpack.c.b16 %v1142, %v1140
          %v1229 = vpack.c.b16 %v1145, %v1143
          %v1230 = vpack.c.b16 %v1146, %v1144
          %v1231 = vpack.c.b16 %v1149, %v1147
          %v1232 = vpack.c.b16 %v1150, %v1148
          %v1233 = vpack.c.b16 %v1153, %v1151
          %v1234 = vpack.c.b16 %v1154, %v1152
          %v1235 = vpack.c.b16 %v1157, %v1155
          %v1236 = vpack.c.b16 %v1158, %v1156
          %v1237 = vpack.c.b16 %v1161, %v1159
          %v1238 = vpack.c.b16 %v1162, %v1160
          %v1239 = vpack.c.b16 %v1165, %v1163
          %v1240 = vpack.c.b16 %v1166, %v1164
          %v1241 = vpack.c.b16 %v1169, %v1167
          %v1242 = vpack.c.b16 %v1170, %v1168
          %v1243 = vpack.c.b16 %v1173, %v1171
          %v1244 = vpack.c.b16 %v1174, %v1172
          %v1245 = vpack.c.b16 %v1177, %v1175
          %v1246 = vpack.c.b16 %v1178, %v1176
          %v1247 = vpack.c.b16 %v1181, %v1179
          %v1248 = vpack.c.b16 %v1182, %v1180
          %v1249 = vpack.c.b16 %v1185, %v1183
          %v1250 = vpack.c.b16 %v1186, %v1184
          %v1251 = vpack.c.b16 %v1189, %v1187
          %v1252 = vpack.c.b16 %v1190, %v1188
          %v1253 = vpack.c.b16 %v1193, %v1191
          %v1254 = vpack.c.b16 %v1194, %v1192
          %v1255 = vpack.c.b16 %v1197, %v1195
          %v1256 = vpack.c.b16 %v1198, %v1196
          %v1257 = vpack.c.b16 %v1201, %v1199
          %v1258 = vpack.c.b16 %v1202, %v1200
          %v1259 = vpack.c.b16 %v1205, %v1203
          %v1260 = vpack.c.b16 %v1206, %v1204
          %v1261 = vpack.c.b16 %v1209, %v1207
          %v1262 = vpack.c.b16 %v1210, %v1208
          %v1263 = vpack.c.b16 %v1213, %v1211
          %v1264 = vpack.c.b16 %v1214, %v1212
          %v1265 = vpack.c.b16 %v1217, %v1215
          %v1266 = vpack.c.b16 %v1218, %v1216
          %1315 = vmatpush.bf16.msra.mxu0 %v1233
          %1316 = vmatpush.bf16.msra.mxu0 %v1231
          %1317 = vmatpush.bf16.msra.mxu0 %v1229
          %1318 = vmatpush.bf16.msra.mxu0 %v1227
          %1319 = vmatpush.bf16.msra.mxu0 %v1225
          %1320 = vmatpush.bf16.msra.mxu0 %v1223
          %1321 = vmatpush.bf16.msra.mxu0 %v1221
          %1322 = vmatpush.bf16.msra.mxu0 %v1219
          %1323 = vmatmul.bf16.gmra.mxu0 %v1018
          %v1324 = vpop.f32.mrf.mxu0
          %v1325 = vadd.f32 %v1071, %v1324
          %v1326 = vpop.f32.mrf.mxu0
          %v1327 = vadd.f32 %v1071, %v1326
          %1328 = vdwg.mxu0
          %1329 = vmatpush.bf16.msra.mxu0 %v1249
          %1330 = vmatpush.bf16.msra.mxu0 %v1247
          %1331 = vmatpush.bf16.msra.mxu0 %v1245
          %1332 = vmatpush.bf16.msra.mxu0 %v1243
          %1333 = vmatpush.bf16.msra.mxu0 %v1241
          %1334 = vmatpush.bf16.msra.mxu0 %v1239
          %1335 = vmatpush.bf16.msra.mxu0 %v1237
          %1336 = vmatpush.bf16.msra.mxu0 %v1235
          %1337 = vmatmul.bf16.gmra.mxu0 %v1019
          %v1338 = vpop.f32.mrf.mxu0
          %v1339 = vadd.f32 %v1325, %v1338
          %v1340 = vpop.f32.mrf.mxu0
          %v1341 = vadd.f32 %v1327, %v1340
          %1342 = vdwg.mxu0
          %1343 = vmatpush.bf16.msra.mxu0 %v1265
          %1344 = vmatpush.bf16.msra.mxu0 %v1263
          %1345 = vmatpush.bf16.msra.mxu0 %v1261
          %1346 = vmatpush.bf16.msra.mxu0 %v1259
          %1347 = vmatpush.bf16.msra.mxu0 %v1257
          %1348 = vmatpush.bf16.msra.mxu0 %v1255
          %1349 = vmatpush.bf16.msra.mxu0 %v1253
          %1350 = vmatpush.bf16.msra.mxu0 %v1251
          %1351 = vmatmul.bf16.gmra.mxu0 %v1020
          %v1352 = vpop.f32.mrf.mxu0
          %v1353 = vadd.f32 %v1339, %v1352
          %v1354 = vpop.f32.mrf.mxu0
          %v1355 = vadd.f32 %v1341, %v1354
          %1356 = vdwg.mxu0
          %1357 = vmatpush.bf16.msra.mxu0 %v1234
          %1358 = vmatpush.bf16.msra.mxu0 %v1232
          %1359 = vmatpush.bf16.msra.mxu0 %v1230
          %1360 = vmatpush.bf16.msra.mxu0 %v1228
          %1361 = vmatpush.bf16.msra.mxu0 %v1226
          %1362 = vmatpush.bf16.msra.mxu0 %v1224
          %1363 = vmatpush.bf16.msra.mxu0 %v1222
          %1364 = vmatpush.bf16.msra.mxu0 %v1220
          %1365 = vmatmul.bf16.gmra.mxu0 %v1018
          %v1366 = vpop.f32.mrf.mxu0
          %v1367 = vadd.f32 %v1072, %v1366
          %v1368 = vpop.f32.mrf.mxu0
          %v1369 = vadd.f32 %v1072, %v1368
          %1370 = vdwg.mxu0
          %1371 = vmatpush.bf16.msra.mxu0 %v1250
          %1372 = vmatpush.bf16.msra.mxu0 %v1248
          %1373 = vmatpush.bf16.msra.mxu0 %v1246
          %1374 = vmatpush.bf16.msra.mxu0 %v1244
          %1375 = vmatpush.bf16.msra.mxu0 %v1242
          %1376 = vmatpush.bf16.msra.mxu0 %v1240
          %1377 = vmatpush.bf16.msra.mxu0 %v1238
          %1378 = vmatpush.bf16.msra.mxu0 %v1236
          %1379 = vmatmul.bf16.gmra.mxu0 %v1019
          %v1380 = vpop.f32.mrf.mxu0
          %v1381 = vadd.f32 %v1367, %v1380
          %v1382 = vpop.f32.mrf.mxu0
          %v1383 = vadd.f32 %v1369, %v1382
          %1384 = vdwg.mxu0
          %1385 = vmatpush.bf16.msra.mxu0 %v1266
          %1386 = vmatpush.bf16.msra.mxu0 %v1264
          %1387 = vmatpush.bf16.msra.mxu0 %v1262
          %1388 = vmatpush.bf16.msra.mxu0 %v1260
          %1389 = vmatpush.bf16.msra.mxu0 %v1258
          %1390 = vmatpush.bf16.msra.mxu0 %v1256
          %1391 = vmatpush.bf16.msra.mxu0 %v1254
          %1392 = vmatpush.bf16.msra.mxu0 %v1252
          %1393 = vmatmul.bf16.gmra.mxu0 %v1020
          %v1394 = vpop.f32.mrf.mxu0
          %v1395 = vadd.f32 %v1381, %v1394
          %v1396 = vpop.f32.mrf.mxu0
          %v1397 = vadd.f32 %v1383, %v1396
          %1398 = vdwg.mxu0
          %v1399 = vmax.f32 %v1353, %v1395
          %1400 = vmax.xlane.f32.xlu0 %v1399
          %v1401 = vpop.xlane.xlu0 %1400
          %v1402 = vmax.f32 %v1355, %v1397
          %1403 = vmax.xlane.f32.xlu0 %v1402
          %v1404 = vpop.xlane.xlu0 %1403
          %v1405 = vsub.f32 %v1353, %v1401
          %v1406 = vsub.f32 %v1395, %v1401
          %v1407 = vsub.f32 %v1355, %v1404
          %v1408 = vsub.f32 %v1397, %v1404
          %v1409 = vmul.f32 %v1405, 1.442695
          %v1410 = vpow.pop %v1409
          %v1411 = vmul.f32 %v1406, 1.442695
          %v1412 = vpow.pop %v1411
          %v1413 = vmul.f32 %v1407, 1.442695
          %v1414 = vpow.pop %v1413
          %v1415 = vmul.f32 %v1408, 1.442695
          %v1416 = vpow.pop %v1415
          %v1417 = vadd.f32 %v1410, %v1412
          %1418 = vadd.xlane.f32.xlu0 %v1417
          %v1419 = vpop.xlane.xlu0 %1418
          %v1420 = vadd.f32 %v1414, %v1416
          %1421 = vadd.xlane.f32.xlu0 %v1420
          %v1422 = vpop.xlane.xlu0 %1421
          %v1423 = vlog2.pop %v1419
          %v1424 = vmul.f32 %v1423, 0.6931472
          %v1425 = vlog2.pop %v1422
          %v1426 = vmul.f32 %v1425, 0.6931472
          %v1427 = vsub.f32 %v1405, %v1424
          %v1428 = vsub.f32 %v1406, %v1424
          %v1429 = vsub.f32 %v1407, %v1426
          %v1430 = vsub.f32 %v1408, %v1426
          %s1431 = smul.addr %s468, 8
          %s1432 = scalar_lea.vmem %s446, %s1431 [#allocation11]
          %1433 = vst [vmem:[%s1432] sm:$0xff] %v1427
          %1434 = vst [vmem:[%s1432 + $0x8] sm:$0xff] %v1428
          %1435 = vst [vmem:[%s1432 + $0x10] sm:$0xff] %v1429
          %1436 = vst [vmem:[%s1432 + $0x18] sm:$0xff] %v1430
        $region73: #{tpu_custom_call.1} parent=47 // loop_footer
          %s465 = sadd.s32 1, %s461
        $region74: #{tpu_custom_call.1} parent=47 // loop_footer_branch
          %460 = sbr.rel target = $region70
        $region75: #{tpu_custom_call.1} parent=47 // loop_exit
          _
        %1437 = vst [vmem:[%s453] sm:$0xff] %v466
        %1438 = vst [vmem:[%s453 + $0x8] sm:$0xff] %v467
        %s1439 = sand.u32 %s198, 1
        %s1440 = scalar_lea.sflag [#allocation4], %s1439
        %s1441 = sand.u32 %s198, 1
        %s1442 = smul.addr %s1441, 512
        %s1443 = scalar_lea.vmem [#allocation11], %s1442
        %s1444 = sand.u32 %s224, 1
        %s1445 = scalar_lea.sflag [#allocation13], %s1444
        %s1446 = sand.u32 %s224, 1
        %s1447 = smul.addr %s1446, 16
        %s1448 = scalar_lea.vmem [#allocation12], %s1447
        // Predicated region
        $region76: #{tpu_custom_call.1} parent=47 // pred_check
          %p1449 = pneg %p208
        $region77: #{tpu_custom_call.1} parent=47 // pred_check_branch
          %1451 = sbr.rel (%p1449) target = $region79
        $region78: #{tpu_custom_call.1} parent=47 // pred_region
          #allocation17 [shape = 'u32[6]{0}', space=smem, size = 0x18, scoped, tag = 'DMA stride descriptor']
          %s1452 = smul.u32 2, %s33
          %1454 = vsyncadd %s1440, 0
          %s1455 = smul.addr %s1452, 2
          %s1456 = smul.addr %s1455, 8
          %s1457 = scalar_lea.hbm %s7, %s1456
          %s1459 = sshll.u32 1, 14
          %s1460 = sxor.u32 4294967295, %s1459
          %s1463 = sshll.u32 7, 18
          %s1464 = sxor.u32 4294967295, %s1463
          %s1465 = sand.u32 0, %s1464
          %s1467 = sor.u32 %s1465, 0
          %s1468 = sshll.u32 %s1443, 4
          %s1469 = int_to_ptr.vmem [resolvable:$true] %s1468
          %s1470 = sshll.u32 %s1457, 4
          %s1471 = int_to_ptr.hbm [resolvable:$true] %s1470
          %1477 = sst [smem:[#allocation17]] 512
          %s1478 = scalar_lea.smem [#allocation17], 1
          %1479 = sst [smem:[%s1478]] 1024
          %s1480 = scalar_lea.smem [#allocation17], 2
          %1481 = sst [smem:[%s1480]] 2
          %s1482 = scalar_lea.smem [#allocation17], 3
          %1483 = sst [smem:[%s1482]] 256
          %s1484 = scalar_lea.smem [#allocation17], 4
          %1485 = sst [smem:[%s1484]] 256
          %s1486 = scalar_lea.smem [#allocation17], 5
          %1487 = sst [smem:[%s1486]] 16
          %1489 = dma.general %s1469, 8192, %s1471, %s1440, [#allocation16], [#allocation17], %s1467, 0
        $region79: #{tpu_custom_call.1} parent=47 // pred_fallthru
          _
        // Predicated region
        $region80: #{tpu_custom_call.1} parent=47 // pred_check
          %p1490 = pneg %p234
        $region81: #{tpu_custom_call.1} parent=47 // pred_check_branch
          %1492 = sbr.rel (%p1490) target = $region83
        $region82: #{tpu_custom_call.1} parent=47 // pred_region
          %s1493 = smul.u32 2, %s33
          %1495 = vsyncadd %s1445, 0
          %s1496 = smul.addr %s1493, 8
          %s1497 = scalar_lea.hbm %s8, %s1496
          %s1498 = sshll.u32 %s1448, 4
          %s1499 = int_to_ptr.vmem [resolvable:$true] %s1498
          %s1500 = sshll.u32 %s1497, 4
          %s1501 = int_to_ptr.hbm [resolvable:$true] %s1500
          %1506 = dma.vmem_to_hbm [thread:$0]  %s1499, 256, %s1501, %s1445, 128, 128, 8
        $region83: #{tpu_custom_call.1} parent=47 // pred_fallthru
          _
      $region48: #{tpu_custom_call.1} parent=5 // pred_fallthru
        _
      %p1507 = scmp.le.s32.totalorder 2, %s28
      // Predicated region
      $region84: #{tpu_custom_call.1} parent=5 // pred_check
        %p1508 = pneg %p1507
      $region85: #{tpu_custom_call.1} parent=5 // pred_check_branch
        %1510 = sbr.rel (%p1508) target = $region87
      $region86: #{tpu_custom_call.1} parent=5 // pred_region
        %s1511 = ssub.s32 %s28, 2
        // Predicated region
        $region88: #{tpu_custom_call.1} parent=86 // pred_check
          %p1512 = pneg %p214
        $region89: #{tpu_custom_call.1} parent=86 // pred_check_branch
          %1514 = sbr.rel (%p1512) target = $region91
        $region90: #{tpu_custom_call.1} parent=86 // pred_region
          %s1515 = sand.u32 %s199, 1
          %s1516 = scalar_lea.sflag [#allocation4], %s1515
          %s1517 = sand.u32 %s199, 1
          %s1518 = smul.addr %s1517, 512
          %s1519 = scalar_lea.vmem [#allocation11], %s1518
          %1521 = dma.done %s1516, 8192
        $region91: #{tpu_custom_call.1} parent=86 // pred_fallthru
          _
        // Predicated region
        $region92: #{tpu_custom_call.1} parent=86 // pred_check
          %p1522 = pneg %p240
        $region93: #{tpu_custom_call.1} parent=86 // pred_check_branch
          %1524 = sbr.rel (%p1522) target = $region95
        $region94: #{tpu_custom_call.1} parent=86 // pred_region
          %s1525 = sand.u32 %s225, 1
          %s1526 = scalar_lea.sflag [#allocation13], %s1525
          %s1527 = sand.u32 %s225, 1
          %s1528 = smul.addr %s1527, 16
          %s1529 = scalar_lea.vmem [#allocation12], %s1528
          %1531 = dma.done %s1526, 256
        $region95: #{tpu_custom_call.1} parent=86 // pred_fallthru
          _
      $region87: #{tpu_custom_call.1} parent=5 // pred_fallthru
        _
    $region6: #{tpu_custom_call.1} parent=1 // loop_footer
      %s32 = sadd.s32 1, %s28
    $region7: #{tpu_custom_call.1} parent=1 // loop_footer_branch
      %27 = sbr.rel target = $region3
    $region8: #{tpu_custom_call.1} parent=1 // loop_exit
      _
    %1532 = vsyncpa [#allocation3], 1
    %s1533 = scalar_lea.sflag [#allocation3], 1
    %1534 = vsyncpa %s1533, 1
    %1535 = vsyncpa [#allocation6], 1
    %s1536 = scalar_lea.sflag [#allocation6], 1
    %1537 = vsyncpa %s1536, 1
    %1538 = vsyncpa [#allocation9], 1
    %1539 = vsyncpa [#allocation4], 1
    %s1540 = scalar_lea.sflag [#allocation4], 1
    %1541 = vsyncpa %s1540, 1
    %1542 = vsyncpa [#allocation13], 1
    %s1543 = scalar_lea.sflag [#allocation13], 1
    %1544 = vsyncpa %s1543, 1

</llo_original>
